<compile_context>
chip_gen: v5e
topology: v5e:2x2
jax: 0.10.0
libtpu: 0.0.40
codegen_flags: <defaults>
</compile_context>

<pallas_src>
import math

import jax
import jax.numpy as jnp
import numpy as np
from jax.experimental import pallas as pl
from jax.experimental.pallas import tpu as pltpu

SCALE = math.sqrt(0.5)          # self.scale
TEMP_SCALE = math.sqrt(0.0067)  # self.temp_scale


def encoder_kernel(src_ref, pos_ref, mask_ref, we2h_ref, be2h_ref,
                   wconv_ref, bconv_ref, wh2e_ref, bh2e_ref,
                   wlen_ref, blen_ref,
                   lenpred_ref, conved_ref, embedded_ref,
                   h_ref):
    layer = pl.program_id(1)
    n_layers = pl.num_programs(1)
    Bt, L, E = src_ref.shape
    M, H = h_ref.shape                       # M = Bt * L
    K = wconv_ref.shape[1]
    pad = (K - 1) // 2

    # ----- layer 0: embedding + emb2hid (once per batch block) -------------------
    @pl.when(layer == 0)
    def _init():
        emb = src_ref[...] + pos_ref[...][None]                        # (Bt,L,E) f32
        embedded_ref[...] = emb
        e2 = emb.reshape(M, E).astype(jnp.bfloat16)
        h_ref[...] = jnp.tanh(
            jnp.dot(e2, we2h_ref[...], preferred_element_type=jnp.float32)
            + be2h_ref[...])

    h = h_ref[...]                                                     # (M,H) f32

    def shifted(off):
        # y[i] = h[i + off] within each length-L sequence, zeros outside.
        if off == 0:
            return h
        rolled = pltpu.roll(h, shift=(-off) % M, axis=0)
        return rolled * mask_ref[off + pad]                            # (M,1) f32 mask

    # ----- one conv layer per grid step: fused lin+gate matmul, GLU, residual ----
    acc = jnp.dot(shifted(-pad).astype(jnp.bfloat16), wconv_ref[0, 0],
                  preferred_element_type=jnp.float32) + bconv_ref[0]   # (M,2H) f32
    for j in range(1, K):
        acc = acc + jnp.dot(shifted(j - pad).astype(jnp.bfloat16), wconv_ref[0, j],
                            preferred_element_type=jnp.float32)
    lin = acc[:, :H]
    gate = acc[:, H:]
    h_new = (lin * jax.nn.sigmoid(gate) + h) * SCALE
    h_ref[...] = h_new

    # ----- last layer: length head + hid2emb ------------------------------------
    @pl.when(layer == n_layers - 1)
    def _finalize():
        rows = [jnp.sum(h_new[b * L:(b + 1) * L, :], axis=0, keepdims=True)
                for b in range(Bt)]
        enc_sum = jnp.concatenate(rows, axis=0) * TEMP_SCALE           # (Bt,H) f32
        lenpred_ref[0] = (jnp.dot(enc_sum, wlen_ref[...],
                                  preferred_element_type=jnp.float32)
                          + blen_ref[...])                             # (Bt,1)
        conved = jnp.tanh(
            jnp.dot(h_new.astype(jnp.bfloat16), wh2e_ref[...],
                    preferred_element_type=jnp.float32) + bh2e_ref[...])
        conved_ref[...] = conved.reshape(Bt, L, E)


def encoder_forward(src, params, *, block_batch=None):
    B, L, E = src.shape
    H = params["we2h"].shape[1]
    n_layers, K = params["wconv"].shape[:2]
    pad = (K - 1) // 2

    if block_batch is None:
        limit = max(1, 256 // L)                 # aim for M = Bt*L near MXU height
        if B >= 2:
            limit = max(1, min(limit, B // 2))   # keep >=2 grid steps (megacore/v7x)
        block_batch = max(d for d in range(1, B + 1) if B % d == 0 and d <= limit)
    Bt = block_batch
    assert B % Bt == 0
    nb = B // Bt
    M = Bt * L

    # Host-precomputed multiplicative shift-validity masks (hoisted out of the kernel).
    t = np.tile(np.arange(L), Bt)
    mask = np.stack(
        [((t + (j - pad) >= 0) & (t + (j - pad) < L)).astype(np.float32)
         for j in range(K)])[:, :, None]                               # (K, M, 1)
    mask = jnp.asarray(mask)

    # Explicit scoped-VMEM budget from per-step block footprint (x2 double buffers).
    def nb_(shape, itemsize):
        return int(np.prod(shape)) * itemsize
    in_bytes = (nb_((Bt, L, E), 4) + nb_((L, E), 4) + nb_((K, M, 1), 4)
                + nb_((E, H), 2) + nb_((1, H), 4)
                + nb_((K, H, 2 * H), 2) + nb_((1, 2 * H), 4)
                + nb_((H, E), 2) + nb_((1, E), 4) + nb_((H, 1), 4) + 4)
    out_bytes = nb_((Bt, 1), 4) + 2 * nb_((Bt, L, E), 4)
    scratch_bytes = nb_((M, H), 4)
    est = 2 * (in_bytes + out_bytes) + scratch_bytes
    vmem_limit = int(min(96 * 2**20, max(32 * 2**20, 2 * est)))  # keep < v7x 64MiB at real sizes

    def _full(a):
        zeros = (0,) * a.ndim
        return pl.BlockSpec(a.shape, lambda b, l, _z=zeros: _z)

    len3, conved, embedded = pl.pallas_call(
        encoder_kernel,
        grid=(nb, n_layers),
        in_specs=[
            pl.BlockSpec((Bt, L, E), lambda b, l: (b, 0, 0)),          # src
            _full(params["pos"]),                                      # pos (L,E)
            _full(mask),                                               # shift masks
            _full(params["we2h"]), _full(params["be2h"]),
            pl.BlockSpec((1, K, H, 2 * H), lambda b, l: (l, 0, 0, 0)),  # conv W (per layer)
            pl.BlockSpec((1, 1, 2 * H), lambda b, l: (l, 0, 0)),        # conv b (per layer)
            _full(params["wh2e"]), _full(params["bh2e"]),
            _full(params["wlen"]), _full(params["blen"]),
        ],
        out_specs=(
            pl.BlockSpec((1, Bt, 1), lambda b, l: (b, 0, 0)),          # len_pred
            pl.BlockSpec((Bt, L, E), lambda b, l: (b, 0, 0)),          # conved
            pl.BlockSpec((Bt, L, E), lambda b, l: (b, 0, 0)),          # embedded
        ),
        out_shape=(
            jax.ShapeDtypeStruct((nb, Bt, 1), jnp.float32),
            jax.ShapeDtypeStruct((B, L, E), jnp.float32),
            jax.ShapeDtypeStruct((B, L, E), jnp.float32),
        ),
        scratch_shapes=[pltpu.VMEM((M, H), jnp.float32)],              # carried activation
        compiler_params=pltpu.CompilerParams(
            dimension_semantics=("parallel", "arbitrary"),
            vmem_limit_bytes=vmem_limit),
    )(src, params["pos"], mask, params["we2h"], params["be2h"],
      params["wconv"], params["bconv"], params["wh2e"], params["bh2e"],
      params["wlen"], params["blen"])
    return len3.reshape(B, 1), conved, embedded


def init_params(key, emb_dim, hid_dim, n_layers, kernel_size, max_length, src_len):
    keys = jax.random.split(key, 9)
    pos_table = 0.1 * jax.random.normal(keys[0], (max_length, emb_dim), jnp.float32)
    we2h = 0.1 * jax.random.normal(keys[1], (emb_dim, hid_dim), jnp.float32)
    be2h = 0.1 * jax.random.normal(keys[2], (1, hid_dim), jnp.float32)
    # torch Conv1d weight: (2*hid, hid, K) == W[o, c, j]; keep lin/gate halves fused and
    # transpose to (layer, tap, C_in, C_out=2H)  ->  [..., :H] = lin, [..., H:] = gate.
    wconv_t = 0.1 * jax.random.normal(
        keys[3], (n_layers, 2 * hid_dim, hid_dim, kernel_size), jnp.float32)
    bconv_t = 0.1 * jax.random.normal(keys[4], (n_layers, 2 * hid_dim), jnp.float32)
    wconv = jnp.transpose(wconv_t, (0, 3, 2, 1))            # (layer, K, H, 2H)
    bconv = bconv_t[:, None, :]                             # (layer, 1, 2H)
    wh2e = 0.1 * jax.random.normal(keys[5], (hid_dim, emb_dim), jnp.float32)
    bh2e = 0.1 * jax.random.normal(keys[6], (1, emb_dim), jnp.float32)
    wlen = 0.1 * jax.random.normal(keys[7], (hid_dim, 1), jnp.float32)
    blen = 0.1 * jax.random.normal(keys[8], (1, 1), jnp.float32)
    return dict(
        pos=pos_table[:src_len],
        we2h=we2h.astype(jnp.bfloat16), be2h=be2h,
        wconv=wconv.astype(jnp.bfloat16), bconv=bconv,
        wh2e=wh2e.astype(jnp.bfloat16), bh2e=bh2e,
        wlen=wlen, blen=blen)   # length head kept f32 (accumulation-sensitive)


def reference_forward(src, params):
    """Pure-JAX reference (eval mode) mirroring the kernel's bf16 matmul boundaries."""
    B, L, E = src.shape
    H = params["we2h"].shape[1]
    n_layers, K = params["wconv"].shape[:2]
    pad = (K - 1) // 2
    embedded = src + params["pos"][None, :, :]
    h = jnp.tanh(jnp.einsum("ble,eh->blh", embedded.astype(jnp.bfloat16),
                            params["we2h"], preferred_element_type=jnp.float32)
                 + params["be2h"][None])
    for layer in range(n_layers):
        xp = jnp.pad(h, ((0, 0), (pad, pad), (0, 0)))
        acc = jnp.zeros((B, L, 2 * H), jnp.float32) + params["bconv"][layer][None]
        for j in range(K):
            xs = xp[:, j:j + L, :]
            acc = acc + jnp.einsum("blh,hf->blf", xs.astype(jnp.bfloat16),
                                   params["wconv"][layer, j],
                                   preferred_element_type=jnp.float32)
        lin, gate = acc[..., :H], acc[..., H:]
        h = (lin * jax.nn.sigmoid(gate) + h) * SCALE
    enc_sum = jnp.sum(h, axis=1) * TEMP_SCALE
    len_pred = enc_sum @ params["wlen"] + params["blen"]
    conved = jnp.tanh(jnp.einsum("blh,he->ble", h.astype(jnp.bfloat16),
                                 params["wh2e"], preferred_element_type=jnp.float32)
                      + params["bh2e"][None])
    # conved_embed = (conved + embedded) * SCALE   # computed-but-unreturned in torch
    return len_pred, conved, embedded


if __name__ == "__main__":
    # Small but lane-aligned shapes: 128-wide channels keep vreg lanes / MXU fed.
    B, L, EMB, HID = 8, 16, 128, 128
    N_LAYERS, KSIZE = 3, 3

    key = jax.random.PRNGKey(0)
    k_in, k_par = jax.random.split(key)
    src = jax.random.normal(k_in, (B, L, EMB), jnp.float32)
    params = init_params(k_par, EMB, HID, N_LAYERS, KSIZE,
                         max_length=150, src_len=L)

    len_pred, conved, embedded = encoder_forward(src, params)
    jax.block_until_ready((len_pred, conved, embedded))

    r_len, r_conved, r_emb = reference_forward(src, params)
    np.testing.assert_allclose(np.asarray(len_pred), np.asarray(r_len),
                               rtol=2e-3, atol=2e-3)
    np.testing.assert_allclose(np.asarray(conved), np.asarray(r_conved),
                               rtol=2e-3, atol=2e-3)
    np.testing.assert_allclose(np.asarray(embedded), np.asarray(r_emb),
                               rtol=2e-3, atol=2e-3)
    print("KERNEL_OK")
</pallas_src>

<mosaic_0001>
module attributes {stable_mosaic.version = 11 : i64} {
  func.func @encoder_kernel(%arg0: i32, %arg1: i32, %arg2: memref<4x16x128xf32, #tpu.memory_space<vmem>>, %arg3: memref<16x128xf32, #tpu.memory_space<vmem>>, %arg4: memref<3x64x1xf32, #tpu.memory_space<vmem>>, %arg5: memref<128x128xbf16, #tpu.memory_space<vmem>>, %arg6: memref<1x128xf32, #tpu.memory_space<vmem>>, %arg7: memref<1x3x128x256xbf16, #tpu.memory_space<vmem>>, %arg8: memref<1x1x256xf32, #tpu.memory_space<vmem>>, %arg9: memref<128x128xbf16, #tpu.memory_space<vmem>>, %arg10: memref<1x128xf32, #tpu.memory_space<vmem>>, %arg11: memref<128x1xf32, #tpu.memory_space<vmem>>, %arg12: memref<1x1xf32, #tpu.memory_space<vmem>>, %arg13: memref<1x4x1xf32, #tpu.memory_space<vmem>>, %arg14: memref<4x16x128xf32, #tpu.memory_space<vmem>>, %arg15: memref<4x16x128xf32, #tpu.memory_space<vmem>>, %arg16: memref<64x128xf32, #tpu.memory_space<vmem>>) attributes {dimension_semantics = [#tpu.dimension_semantics<parallel>, #tpu.dimension_semantics<arbitrary>], iteration_bounds = array<i64: 2, 3>, scalar_prefetch = 0 : i64, scratch_operands = 1 : i64, tpu.core_type = #tpu.core_type<tc>, window_params = [{transform_indices = @transform_0, window_bounds = array<i64: 4, 16, 128>}, {pipeline_mode = #tpu.pipeline_mode<synchronous>, transform_indices = @transform_1, window_bounds = array<i64: 16, 128>}, {pipeline_mode = #tpu.pipeline_mode<synchronous>, transform_indices = @transform_2, window_bounds = array<i64: 3, 64, 1>}, {pipeline_mode = #tpu.pipeline_mode<synchronous>, transform_indices = @transform_3, window_bounds = array<i64: 128, 128>}, {pipeline_mode = #tpu.pipeline_mode<synchronous>, transform_indices = @transform_4, window_bounds = array<i64: 1, 128>}, {transform_indices = @transform_5, window_bounds = array<i64: 1, 3, 128, 256>}, {transform_indices = @transform_6, window_bounds = array<i64: 1, 1, 256>}, {pipeline_mode = #tpu.pipeline_mode<synchronous>, transform_indices = @transform_7, window_bounds = array<i64: 128, 128>}, {pipeline_mode = #tpu.pipeline_mode<synchronous>, transform_indices = @transform_8, window_bounds = array<i64: 1, 128>}, {pipeline_mode = #tpu.pipeline_mode<synchronous>, transform_indices = @transform_9, window_bounds = array<i64: 128, 1>}, {pipeline_mode = #tpu.pipeline_mode<synchronous>, transform_indices = @transform_10, window_bounds = array<i64: 1, 1>}, {transform_indices = @transform_11, window_bounds = array<i64: 1, 4, 1>}, {transform_indices = @transform_12, window_bounds = array<i64: 4, 16, 128>}, {transform_indices = @transform_13, window_bounds = array<i64: 4, 16, 128>}]} {
    %c0_i32 = arith.constant 0 : i32
    %0 = arith.cmpi eq, %arg1, %c0_i32 : i32
    %1 = arith.extui %0 : i1 to i32
    %c0_i32_0 = arith.constant 0 : i32
    %2 = arith.cmpi ne, %1, %c0_i32_0 : i32
    scf.if %2 {
      %c0_28 = arith.constant 0 : index
      %c0_29 = arith.constant 0 : index
      %c0_30 = arith.constant 0 : index
      %47 = vector.load %arg2[%c0_28, %c0_29, %c0_30] : memref<4x16x128xf32, #tpu.memory_space<vmem>>, vector<4x16x128xf32>
      %c0_31 = arith.constant 0 : index
      %c0_32 = arith.constant 0 : index
      %48 = vector.load %arg3[%c0_31, %c0_32] : memref<16x128xf32, #tpu.memory_space<vmem>>, vector<16x128xf32>
      %49 = vector.shape_cast %48 : vector<16x128xf32> to vector<1x16x128xf32>
      %50 = vector.broadcast %49 : vector<1x16x128xf32> to vector<4x16x128xf32>
      %51 = arith.addf %47, %50 : vector<4x16x128xf32>
      %c0_33 = arith.constant 0 : index
      %c0_34 = arith.constant 0 : index
      %c0_35 = arith.constant 0 : index
      %52 = vector.load %arg15[%c0_33, %c0_34, %c0_35] : memref<4x16x128xf32, #tpu.memory_space<vmem>>, vector<4x16x128xf32>
      tpu.vector_store %arg15[%c0_33, %c0_34, %c0_35], %51 {strides = array<i32>} : memref<4x16x128xf32, #tpu.memory_space<vmem>>, vector<4x16x128xf32>,
      %53 = vector.shape_cast %51 : vector<4x16x128xf32> to vector<64x128xf32>
      %54 = arith.truncf %53 : vector<64x128xf32> to vector<64x128xbf16>
      %c0_36 = arith.constant 0 : index
      %c0_37 = arith.constant 0 : index
      %55 = vector.load %arg5[%c0_36, %c0_37] : memref<128x128xbf16, #tpu.memory_space<vmem>>, vector<128x128xbf16>
      %cst_38 = arith.constant dense<0.000000e+00> : vector<64x128xf32>
      %56 = tpu.matmul %54, %55, %cst_38 {dimension_numbers = #tpu.dot_dimension_numbers<[1], [0], [0], [1], [0, 0, 1, 1], [], []>} : vector<64x128xbf16>, vector<128x128xbf16>, vector<64x128xf32> -> vector<64x128xf32>
      %c0_39 = arith.constant 0 : index
      %c0_40 = arith.constant 0 : index
      %57 = vector.load %arg6[%c0_39, %c0_40] : memref<1x128xf32, #tpu.memory_space<vmem>>, vector<1x128xf32>
      %58 = vector.broadcast %57 : vector<1x128xf32> to vector<64x128xf32>
      %59 = arith.addf %56, %58 : vector<64x128xf32>
      %60 = math.tanh %59 : vector<64x128xf32>
      %c0_41 = arith.constant 0 : index
      %c0_42 = arith.constant 0 : index
      %61 = vector.load %arg16[%c0_41, %c0_42] : memref<64x128xf32, #tpu.memory_space<vmem>>, vector<64x128xf32>
      tpu.vector_store %arg16[%c0_41, %c0_42], %60 {strides = array<i32>} : memref<64x128xf32, #tpu.memory_space<vmem>>, vector<64x128xf32>,
    } else {
    }
    %c0 = arith.constant 0 : index
    %c0_1 = arith.constant 0 : index
    %3 = vector.load %arg16[%c0, %c0_1] : memref<64x128xf32, #tpu.memory_space<vmem>>, vector<64x128xf32>
    %c1_i32 = arith.constant 1 : i32
    %4 = tpu.dynamic_rotate %3 by %c1_i32 dim 0 : vector<64x128xf32>, i32 -> vector<64x128xf32>
    %c0_2 = arith.constant 0 : index
    %c0_3 = arith.constant 0 : index
    %c0_4 = arith.constant 0 : index
    %5 = vector.load %arg4[%c0_2, %c0_3, %c0_4] : memref<3x64x1xf32, #tpu.memory_space<vmem>>, vector<1x64x1xf32>
    %6 = vector.shape_cast %5 : vector<1x64x1xf32> to vector<64x1xf32>
    %7 = vector.broadcast %6 : vector<64x1xf32> to vector<64x128xf32>
    %8 = arith.mulf %4, %7 : vector<64x128xf32>
    %9 = arith.truncf %8 : vector<64x128xf32> to vector<64x128xbf16>
    %c0_5 = arith.constant 0 : index
    %c0_6 = arith.constant 0 : index
    %c0_7 = arith.constant 0 : index
    %c0_8 = arith.constant 0 : index
    %10 = vector.load %arg7[%c0_5, %c0_6, %c0_7, %c0_8] : memref<1x3x128x256xbf16, #tpu.memory_space<vmem>>, vector<1x1x128x256xbf16>
    %11 = vector.shape_cast %10 : vector<1x1x128x256xbf16> to vector<128x256xbf16>
    %cst = arith.constant dense<0.000000e+00> : vector<64x256xf32>
    %12 = tpu.matmul %9, %11, %cst {dimension_numbers = #tpu.dot_dimension_numbers<[1], [0], [0], [1], [0, 0, 1, 1], [], []>} : vector<64x128xbf16>, vector<128x256xbf16>, vector<64x256xf32> -> vector<64x256xf32>
    %c0_9 = arith.constant 0 : index
    %c0_10 = arith.constant 0 : index
    %c0_11 = arith.constant 0 : index
    %13 = vector.load %arg8[%c0_9, %c0_10, %c0_11] : memref<1x1x256xf32, #tpu.memory_space<vmem>>, vector<1x1x256xf32>
    %14 = vector.shape_cast %13 : vector<1x1x256xf32> to vector<1x256xf32>
    %15 = vector.broadcast %14 : vector<1x256xf32> to vector<64x256xf32>
    %16 = arith.addf %12, %15 : vector<64x256xf32>
    %17 = arith.truncf %3 : vector<64x128xf32> to vector<64x128xbf16>
    %c0_12 = arith.constant 0 : index
    %c1 = arith.constant 1 : index
    %c0_13 = arith.constant 0 : index
    %c0_14 = arith.constant 0 : index
    %18 = vector.load %arg7[%c0_12, %c1, %c0_13, %c0_14] : memref<1x3x128x256xbf16, #tpu.memory_space<vmem>>, vector<1x1x128x256xbf16>
    %19 = vector.shape_cast %18 : vector<1x1x128x256xbf16> to vector<128x256xbf16>
    %cst_15 = arith.constant dense<0.000000e+00> : vector<64x256xf32>
    %20 = tpu.matmul %17, %19, %cst_15 {dimension_numbers = #tpu.dot_dimension_numbers<[1], [0], [0], [1], [0, 0, 1, 1], [], []>} : vector<64x128xbf16>, vector<128x256xbf16>, vector<64x256xf32> -> vector<64x256xf32>
    %21 = arith.addf %16, %20 : vector<64x256xf32>
    %c63_i32 = arith.constant 63 : i32
    %22 = tpu.dynamic_rotate %3 by %c63_i32 dim 0 : vector<64x128xf32>, i32 -> vector<64x128xf32>
    %c2 = arith.constant 2 : index
    %c0_16 = arith.constant 0 : index
    %c0_17 = arith.constant 0 : index
    %23 = vector.load %arg4[%c2, %c0_16, %c0_17] : memref<3x64x1xf32, #tpu.memory_space<vmem>>, vector<1x64x1xf32>
    %24 = vector.shape_cast %23 : vector<1x64x1xf32> to vector<64x1xf32>
    %25 = vector.broadcast %24 : vector<64x1xf32> to vector<64x128xf32>
    %26 = arith.mulf %22, %25 : vector<64x128xf32>
    %27 = arith.truncf %26 : vector<64x128xf32> to vector<64x128xbf16>
    %c0_18 = arith.constant 0 : index
    %c2_19 = arith.constant 2 : index
    %c0_20 = arith.constant 0 : index
    %c0_21 = arith.constant 0 : index
    %28 = vector.load %arg7[%c0_18, %c2_19, %c0_20, %c0_21] : memref<1x3x128x256xbf16, #tpu.memory_space<vmem>>, vector<1x1x128x256xbf16>
    %29 = vector.shape_cast %28 : vector<1x1x128x256xbf16> to vector<128x256xbf16>
    %cst_22 = arith.constant dense<0.000000e+00> : vector<64x256xf32>
    %30 = tpu.matmul %27, %29, %cst_22 {dimension_numbers = #tpu.dot_dimension_numbers<[1], [0], [0], [1], [0, 0, 1, 1], [], []>} : vector<64x128xbf16>, vector<128x256xbf16>, vector<64x256xf32> -> vector<64x256xf32>
    %31 = arith.addf %21, %30 : vector<64x256xf32>
    %32 = vector.extract_strided_slice %31 {offsets = [0, 0], sizes = [64, 128], strides = [1, 1]} : vector<64x256xf32> to vector<64x128xf32>
    %33 = vector.extract_strided_slice %31 {offsets = [0, 128], sizes = [64, 128], strides = [1, 1]} : vector<64x256xf32> to vector<64x128xf32>
    %34 = arith.negf %33 : vector<64x128xf32>
    %35 = math.exp %34 : vector<64x128xf32>
    %cst_23 = arith.constant 1.000000e+00 : f32
    %36 = vector.broadcast %cst_23 : f32 to vector<64x128xf32>
    %37 = arith.addf %36, %35 : vector<64x128xf32>
    %38 = arith.divf %36, %37 : vector<64x128xf32>
    %39 = arith.mulf %32, %38 : vector<64x128xf32>
    %40 = arith.addf %39, %3 : vector<64x128xf32>
    %cst_24 = arith.constant 0.707106769 : f32
    %41 = vector.broadcast %cst_24 : f32 to vector<64x128xf32>
    %42 = arith.mulf %40, %41 : vector<64x128xf32>
    %c0_25 = arith.constant 0 : index
    %c0_26 = arith.constant 0 : index
    %43 = vector.load %arg16[%c0_25, %c0_26] : memref<64x128xf32, #tpu.memory_space<vmem>>, vector<64x128xf32>
    tpu.vector_store %arg16[%c0_25, %c0_26], %42 {strides = array<i32>} : memref<64x128xf32, #tpu.memory_space<vmem>>, vector<64x128xf32>,
    %c2_i32 = arith.constant 2 : i32
    %44 = arith.cmpi eq, %arg1, %c2_i32 : i32
    %45 = arith.extui %44 : i1 to i32
    %c0_i32_27 = arith.constant 0 : i32
    %46 = arith.cmpi ne, %45, %c0_i32_27 : i32
    scf.if %46 {
      %47 = vector.extract_strided_slice %42 {offsets = [0, 0], sizes = [16, 128], strides = [1, 1]} : vector<64x128xf32> to vector<16x128xf32>
      %cst_28 = arith.constant dense<0.000000e+00> : vector<128xf32>
      %48 = vector.multi_reduction <add>, %47, %cst_28 [0] : vector<16x128xf32> to vector<128xf32>
      %49 = vector.shape_cast %48 : vector<128xf32> to vector<1x128xf32>
      %50 = vector.extract_strided_slice %42 {offsets = [16, 0], sizes = [16, 128], strides = [1, 1]} : vector<64x128xf32> to vector<16x128xf32>
      %cst_29 = arith.constant dense<0.000000e+00> : vector<128xf32>
      %51 = vector.multi_reduction <add>, %50, %cst_29 [0] : vector<16x128xf32> to vector<128xf32>
      %52 = vector.shape_cast %51 : vector<128xf32> to vector<1x128xf32>
      %53 = vector.extract_strided_slice %42 {offsets = [32, 0], sizes = [16, 128], strides = [1, 1]} : vector<64x128xf32> to vector<16x128xf32>
      %cst_30 = arith.constant dense<0.000000e+00> : vector<128xf32>
      %54 = vector.multi_reduction <add>, %53, %cst_30 [0] : vector<16x128xf32> to vector<128xf32>
      %55 = vector.shape_cast %54 : vector<128xf32> to vector<1x128xf32>
      %56 = vector.extract_strided_slice %42 {offsets = [48, 0], sizes = [16, 128], strides = [1, 1]} : vector<64x128xf32> to vector<16x128xf32>
      %cst_31 = arith.constant dense<0.000000e+00> : vector<128xf32>
      %57 = vector.multi_reduction <add>, %56, %cst_31 [0] : vector<16x128xf32> to vector<128xf32>
      %58 = vector.shape_cast %57 : vector<128xf32> to vector<1x128xf32>
      %59 = tpu.concatenate %49, %52, %55, %58 in 0 : vector<1x128xf32>, vector<1x128xf32>, vector<1x128xf32>, vector<1x128xf32> -> vector<4x128xf32>
      %cst_32 = arith.constant 0.0818535313 : f32
      %60 = vector.broadcast %cst_32 : f32 to vector<4x128xf32>
      %61 = arith.mulf %59, %60 : vector<4x128xf32>
      %c0_33 = arith.constant 0 : index
      %c0_34 = arith.constant 0 : index
      %62 = vector.load %arg11[%c0_33, %c0_34] : memref<128x1xf32, #tpu.memory_space<vmem>>, vector<128x1xf32>
      %cst_35 = arith.constant dense<0.000000e+00> : vector<4x1xf32>
      %63 = tpu.matmul %61, %62, %cst_35 {dimension_numbers = #tpu.dot_dimension_numbers<[1], [0], [0], [1], [0, 0, 1, 1], [], []>} : vector<4x128xf32>, vector<128x1xf32>, vector<4x1xf32> -> vector<4x1xf32>
      %c0_36 = arith.constant 0 : index
      %c0_37 = arith.constant 0 : index
      %64 = vector.load %arg12[%c0_36, %c0_37] : memref<1x1xf32, #tpu.memory_space<vmem>>, vector<1x1xf32>
      %65 = vector.broadcast %64 : vector<1x1xf32> to vector<4x1xf32>
      %66 = arith.addf %63, %65 : vector<4x1xf32>
      %c0_38 = arith.constant 0 : index
      %c0_39 = arith.constant 0 : index
      %c0_40 = arith.constant 0 : index
      %67 = vector.load %arg13[%c0_38, %c0_39, %c0_40] : memref<1x4x1xf32, #tpu.memory_space<vmem>>, vector<1x4x1xf32>
      %68 = vector.shape_cast %67 : vector<1x4x1xf32> to vector<4x1xf32>
      %69 = vector.shape_cast %66 : vector<4x1xf32> to vector<1x4x1xf32>
      tpu.vector_store %arg13[%c0_38, %c0_39, %c0_40], %69 {strides = array<i32>} : memref<1x4x1xf32, #tpu.memory_space<vmem>>, vector<1x4x1xf32>,
      %70 = arith.truncf %42 : vector<64x128xf32> to vector<64x128xbf16>
      %c0_41 = arith.constant 0 : index
      %c0_42 = arith.constant 0 : index
      %71 = vector.load %arg9[%c0_41, %c0_42] : memref<128x128xbf16, #tpu.memory_space<vmem>>, vector<128x128xbf16>
      %cst_43 = arith.constant dense<0.000000e+00> : vector<64x128xf32>
      %72 = tpu.matmul %70, %71, %cst_43 {dimension_numbers = #tpu.dot_dimension_numbers<[1], [0], [0], [1], [0, 0, 1, 1], [], []>} : vector<64x128xbf16>, vector<128x128xbf16>, vector<64x128xf32> -> vector<64x128xf32>
      %c0_44 = arith.constant 0 : index
      %c0_45 = arith.constant 0 : index
      %73 = vector.load %arg10[%c0_44, %c0_45] : memref<1x128xf32, #tpu.memory_space<vmem>>, vector<1x128xf32>
      %74 = vector.broadcast %73 : vector<1x128xf32> to vector<64x128xf32>
      %75 = arith.addf %72, %74 : vector<64x128xf32>
      %76 = math.tanh %75 : vector<64x128xf32>
      %77 = vector.shape_cast %76 : vector<64x128xf32> to vector<4x16x128xf32>
      %c0_46 = arith.constant 0 : index
      %c0_47 = arith.constant 0 : index
      %c0_48 = arith.constant 0 : index
      %78 = vector.load %arg14[%c0_46, %c0_47, %c0_48] : memref<4x16x128xf32, #tpu.memory_space<vmem>>, vector<4x16x128xf32>
      tpu.vector_store %arg14[%c0_46, %c0_47, %c0_48], %77 {strides = array<i32>} : memref<4x16x128xf32, #tpu.memory_space<vmem>>, vector<4x16x128xf32>,
    } else {
    }
    return
  }
  func.func @transform_0(%arg0: i32, %arg1: i32) -> (i32, i32, i32) {
    %c0_i32 = arith.constant 0 : i32
    %c0_i32_0 = arith.constant 0 : i32
    %c0_i32_1 = arith.constant 0 : i32
    return %arg0, %c0_i32, %c0_i32_0 : i32, i32, i32
  }
  func.func @transform_1(%arg0: i32, %arg1: i32) -> (i32, i32) {
    %c0_i32 = arith.constant 0 : i32
    %c0_i32_0 = arith.constant 0 : i32
    %c0_i32_1 = arith.constant 0 : i32
    return %c0_i32, %c0_i32_0 : i32, i32
  }
  func.func @transform_2(%arg0: i32, %arg1: i32) -> (i32, i32, i32) {
    %c0_i32 = arith.constant 0 : i32
    %c0_i32_0 = arith.constant 0 : i32
    %c0_i32_1 = arith.constant 0 : i32
    %c0_i32_2 = arith.constant 0 : i32
    return %c0_i32, %c0_i32_0, %c0_i32_1 : i32, i32, i32
  }
  func.func @transform_3(%arg0: i32, %arg1: i32) -> (i32, i32) {
    %c0_i32 = arith.constant 0 : i32
    %c0_i32_0 = arith.constant 0 : i32
    %c0_i32_1 = arith.constant 0 : i32
    return %c0_i32, %c0_i32_0 : i32, i32
  }
  func.func @transform_4(%arg0: i32, %arg1: i32) -> (i32, i32) {
    %c0_i32 = arith.constant 0 : i32
    %c0_i32_0 = arith.constant 0 : i32
    %c0_i32_1 = arith.constant 0 : i32
    return %c0_i32, %c0_i32_0 : i32, i32
  }
  func.func @transform_5(%arg0: i32, %arg1: i32) -> (i32, i32, i32, i32) {
    %c0_i32 = arith.constant 0 : i32
    %c0_i32_0 = arith.constant 0 : i32
    %c0_i32_1 = arith.constant 0 : i32
    %c0_i32_2 = arith.constant 0 : i32
    return %arg1, %c0_i32, %c0_i32_0, %c0_i32_1 : i32, i32, i32, i32
  }
  func.func @transform_6(%arg0: i32, %arg1: i32) -> (i32, i32, i32) {
    %c0_i32 = arith.constant 0 : i32
    %c0_i32_0 = arith.constant 0 : i32
    %c0_i32_1 = arith.constant 0 : i32
    return %arg1, %c0_i32, %c0_i32_0 : i32, i32, i32
  }
  func.func @transform_7(%arg0: i32, %arg1: i32) -> (i32, i32) {
    %c0_i32 = arith.constant 0 : i32
    %c0_i32_0 = arith.constant 0 : i32
    %c0_i32_1 = arith.constant 0 : i32
    return %c0_i32, %c0_i32_0 : i32, i32
  }
  func.func @transform_8(%arg0: i32, %arg1: i32) -> (i32, i32) {
    %c0_i32 = arith.constant 0 : i32
    %c0_i32_0 = arith.constant 0 : i32
    %c0_i32_1 = arith.constant 0 : i32
    return %c0_i32, %c0_i32_0 : i32, i32
  }
  func.func @transform_9(%arg0: i32, %arg1: i32) -> (i32, i32) {
    %c0_i32 = arith.constant 0 : i32
    %c0_i32_0 = arith.constant 0 : i32
    %c0_i32_1 = arith.constant 0 : i32
    return %c0_i32, %c0_i32_0 : i32, i32
  }
  func.func @transform_10(%arg0: i32, %arg1: i32) -> (i32, i32) {
    %c0_i32 = arith.constant 0 : i32
    %c0_i32_0 = arith.constant 0 : i32
    %c0_i32_1 = arith.constant 0 : i32
    return %c0_i32, %c0_i32_0 : i32, i32
  }
  func.func @transform_11(%arg0: i32, %arg1: i32) -> (i32, i32, i32) {
    %c0_i32 = arith.constant 0 : i32
    %c0_i32_0 = arith.constant 0 : i32
    %c0_i32_1 = arith.constant 0 : i32
    return %arg0, %c0_i32, %c0_i32_0 : i32, i32, i32
  }
  func.func @transform_12(%arg0: i32, %arg1: i32) -> (i32, i32, i32) {
    %c0_i32 = arith.constant 0 : i32
    %c0_i32_0 = arith.constant 0 : i32
    %c0_i32_1 = arith.constant 0 : i32
    return %arg0, %c0_i32, %c0_i32_0 : i32, i32, i32
  }
  func.func @transform_13(%arg0: i32, %arg1: i32) -> (i32, i32, i32) {
    %c0_i32 = arith.constant 0 : i32
    %c0_i32_0 = arith.constant 0 : i32
    %c0_i32_1 = arith.constant 0 : i32
    return %arg0, %c0_i32, %c0_i32_0 : i32, i32, i32
  }
}

</mosaic_0001>

<llo_original>
// kernel: tpu_custom_call.1
$region0: #{tpu_custom_call.1}
  #allocation0 [shape = 'u32[]', space=smem, size = 0x4, offset = 0x4, fixed_abs, tag = 'smem constant byte address 0x4 - core index']
  #allocation1 [shape = 'u32[72,128]{1,0:T(1,128)}', space=vmem, size = 0x9000, scoped, tag = 'internal scratch']
  #allocation2 [shape = 'f32[64,128]{1,0:T(8,128)}', space=vmem, size = 0x8000, scoped, tag = 'scratch operand']
  #allocation3 [shape = 'f32[1,1]{1,0:T(1,128)S(1)}', space=vmem, size = 0x200, scoped, tag = 'scoped memory for tpu_custom_call.1']
  %s0 = inlined_call_operand.vmem [shape: f32[8,16,128], index: 0, kind: input, shape index: {}]
  %s1 = inlined_call_operand.vmem [shape: f32[16,128], index: 1, kind: input, shape index: {}]
  %s2 = inlined_call_operand.vmem [shape: f32[3,64,1], index: 2, kind: input, shape index: {}]
  %s3 = inlined_call_operand.vmem [shape: bf16[128,128], index: 3, kind: input, shape index: {}]
  %s4 = inlined_call_operand.vmem [shape: f32[1,128], index: 4, kind: input, shape index: {}]
  %s5 = inlined_call_operand.hbm [shape: bf16[3,3,128,256], index: 5, kind: input, shape index: {}]
  %s6 = inlined_call_operand.vmem [shape: f32[3,1,256], index: 6, kind: input, shape index: {}]
  %s7 = inlined_call_operand.vmem [shape: bf16[128,128], index: 7, kind: input, shape index: {}]
  %s8 = inlined_call_operand.vmem [shape: f32[1,128], index: 8, kind: input, shape index: {}]
  %s9 = inlined_call_operand.vmem [shape: f32[128,1], index: 9, kind: input, shape index: {}]
  %s10 = inlined_call_operand.<no memory space> [shape: f32[1,1], index: 10, kind: input, shape index: {}]
  %s11 = inlined_call_operand.vmem [shape: f32[2,4,1], index: 11, kind: output, shape index: {0}]
  %s12 = inlined_call_operand.hbm [shape: f32[8,16,128], index: 12, kind: output, shape index: {1}]
  %s13 = inlined_call_operand.hbm [shape: f32[8,16,128], index: 13, kind: output, shape index: {2}]
  %14 = xla_tuple %s11, %s12, %s13
  %s15 = sld [smem:[#allocation0]]
  $region105: #{tpu_custom_call.1} parent=0
    _
  %s17 = ssub.s32 1, %s15
  %s18 = scalar_select 0, %s17, %s15
  %v19 = vstv %s10
  %20 = vst [vmem:[#allocation3] sm:$0x1] %v19
  $region1: #{tpu_custom_call.1} parent=0
    #allocation4 [shape = 'u8[393216]{0}', space=vmem, size = 0x60000, scoped, tag = 'input window, operand 5']
    #allocation5 [shape = 's32[2]{0}', space=sflag, size = 0x8, scoped, tag = 'scoped memory for tpu_custom_call.1']
    #allocation6 [shape = 's32[2]{0}', space=sflag, size = 0x8, scoped, tag = 'scoped memory for tpu_custom_call.1']
    #allocation7 [shape = 'u8[65536]{0}', space=vmem, size = 0x10000, scoped, tag = 'output window, operand 1']
    #allocation8 [shape = 'u8[65536]{0}', space=vmem, size = 0x10000, scoped, tag = 'output window, operand 2']
    #allocation9 [shape = 's32[2]{0}', space=sflag, size = 0x8, scoped, tag = 'scoped memory for tpu_custom_call.1']
    %21 = vsyncpa [#allocation5], 0
    %s22 = scalar_lea.sflag [#allocation5], 1
    %23 = vsyncpa %s22, 0
    %24 = vsyncpa [#allocation6], 0
    %s25 = scalar_lea.sflag [#allocation6], 1
    %26 = vsyncpa %s25, 0
    %27 = vsyncpa [#allocation9], 0
    %s28 = scalar_lea.sflag [#allocation9], 1
    %29 = vsyncpa %s28, 0
    loop: start=0, step=1, limit=8
    $region2: #{tpu_custom_call.1} parent=1 // loop_pre_header
      _
    $region3: #{tpu_custom_call.1} parent=1 // loop_header
      %s31 = sphi 0, %s35
      %p32 = scmp.ge.s32.totalorder %s31, 8
      %s38 = sphi 0, %s50
      %s39 = sphi 0, %s46
      %s40 = sphi 0, %s38
      %s41 = sphi 0, %s39
      %s42 = sphi 0, %s40
      %s43 = sphi 0, %s41
      %s53 = sphi 0, %s55
      %s56 = sphi 0, %s53
      %s57 = sphi 0, %s56
      %s73 = sphi 0, %s57
      %s77 = sphi 0, %s77
      %s79 = sphi 0, %s77
      %s80 = sphi 0, %s79
      %s94 = sphi 0, %s80
      %s98 = sphi 0, %s98
      %s100 = sphi 0, %s98
      %s101 = sphi 0, %s100
      %s115 = sphi 0, %s101
      %s119 = sphi 0, %s119
      %s121 = sphi 0, %s119
      %s122 = sphi 0, %s121
      %s136 = sphi 0, %s122
      %s140 = sphi 0, %s140
      %s142 = sphi 0, %s140
      %s143 = sphi 0, %s142
      %s157 = sphi 0, %s143
      %s163 = sphi 0, %s165
      %s166 = sphi 0, %s163
      %s167 = sphi 0, %s166
      %s183 = sphi 0, %s167
      %s189 = sphi 0, %s191
      %s192 = sphi 0, %s189
      %s193 = sphi 0, %s192
      %s209 = sphi 0, %s193
      %s213 = sphi 0, %s213
      %s215 = sphi 0, %s213
      %s216 = sphi 0, %s215
      %s230 = sphi 0, %s216
      %s234 = sphi 0, %s234
      %s236 = sphi 0, %s234
      %s237 = sphi 0, %s236
      %s251 = sphi 0, %s237
      %s255 = sphi 0, %s255
      %s257 = sphi 0, %s255
      %s258 = sphi 0, %s257
      %s272 = sphi 0, %s258
      %s276 = sphi 0, %s276
      %s278 = sphi 0, %s276
      %s279 = sphi 0, %s278
      %s293 = sphi 0, %s279
      %s299 = sphi 0, %s301
      %s302 = sphi 0, %s299
      %s303 = sphi 0, %s302
      %s319 = sphi 0, %s303
      %s325 = sphi 0, %s327
      %s328 = sphi 0, %s325
      %s329 = sphi 0, %s328
      %s345 = sphi 0, %s329
      %s351 = sphi 0, %s353
      %s354 = sphi 0, %s351
      %s355 = sphi 0, %s354
      %s371 = sphi 0, %s355
    $region4: #{tpu_custom_call.1} parent=1 // loop_header_branch
      %34 = sbr.rel (%p32) target = $region8
    $region5: #{tpu_custom_call.1} parent=1 // loop_body
      %s36 = ssub.s32 %s31, 1
      %s37 = ssub.s32 %s31, 2
      %s44 = sadd.s32 1, %s39
      %p45 = scmp.ge.s32.totalorder %s44, 3
      %s46 = scalar_select %p45, 0, %s44
      %s47 = sadd.s32 1, %s38
      %s48 = scalar_select %p45, %s47, %s38
      %p49 = scmp.ge.s32.totalorder %s48, 2
      %s50 = scalar_select %p49, 0, %s48
      %s51 = ssub.s32 %s38, %s50
      %p52 = scmp.eq.s32.totalorder %s51, 0
      %s54 = sadd.s32 %s53, 1
      %s55 = scalar_select %p52, %s53, %s54
      %p58 = pneg %p52
      %p59 = scmp.eq.s32.totalorder %s31, 5
      %p60 = por %p58, %p59
      %p61 = scmp.ne.s32.totalorder %s53, %s56
      %p62 = scmp.eq.s32.totalorder %s31, 0
      %p63 = por %p61, %p62
      %p64 = scmp.ne.s32.totalorder %s53, %s56
      %p65 = scmp.eq.s32.totalorder %s36, 5
      %p66 = por %p64, %p65
      %p67 = scmp.ne.s32.totalorder %s56, %s57
      %p68 = scmp.eq.s32.totalorder %s36, 0
      %p69 = por %p67, %p68
      %p70 = scmp.ne.s32.totalorder %s56, %s57
      %p71 = scmp.eq.s32.totalorder %s37, 5
      %p72 = por %p70, %p71
      %p74 = scmp.ne.s32.totalorder %s57, %s73
      %p75 = scmp.eq.s32.totalorder %s37, 0
      %p76 = por %p74, %p75
      %s78 = sadd.s32 %s77, 1
      %p81 = scmp.eq.s32.totalorder %s31, 5
      %p82 = scmp.ne.s32.totalorder %s77, %s79
      %p83 = scmp.eq.s32.totalorder %s31, 0
      %p84 = por %p82, %p83
      %p85 = scmp.ne.s32.totalorder %s77, %s79
      %p86 = scmp.eq.s32.totalorder %s36, 5
      %p87 = por %p85, %p86
      %p88 = scmp.ne.s32.totalorder %s79, %s80
      %p89 = scmp.eq.s32.totalorder %s36, 0
      %p90 = por %p88, %p89
      %p91 = scmp.ne.s32.totalorder %s79, %s80
      %p92 = scmp.eq.s32.totalorder %s37, 5
      %p93 = por %p91, %p92
      %p95 = scmp.ne.s32.totalorder %s80, %s94
      %p96 = scmp.eq.s32.totalorder %s37, 0
      %p97 = por %p95, %p96
      %s99 = sadd.s32 %s98, 1
      %p102 = scmp.eq.s32.totalorder %s31, 5
      %p103 = scmp.ne.s32.totalorder %s98, %s100
      %p104 = scmp.eq.s32.totalorder %s31, 0
      %p105 = por %p103, %p104
      %p106 = scmp.ne.s32.totalorder %s98, %s100
      %p107 = scmp.eq.s32.totalorder %s36, 5
      %p108 = por %p106, %p107
      %p109 = scmp.ne.s32.totalorder %s100, %s101
      %p110 = scmp.eq.s32.totalorder %s36, 0
      %p111 = por %p109, %p110
      %p112 = scmp.ne.s32.totalorder %s100, %s101
      %p113 = scmp.eq.s32.totalorder %s37, 5
      %p114 = por %p112, %p113
      %p116 = scmp.ne.s32.totalorder %s101, %s115
      %p117 = scmp.eq.s32.totalorder %s37, 0
      %p118 = por %p116, %p117
      %s120 = sadd.s32 %s119, 1
      %p123 = scmp.eq.s32.totalorder %s31, 5
      %p124 = scmp.ne.s32.totalorder %s119, %s121
      %p125 = scmp.eq.s32.totalorder %s31, 0
      %p126 = por %p124, %p125
      %p127 = scmp.ne.s32.totalorder %s119, %s121
      %p128 = scmp.eq.s32.totalorder %s36, 5
      %p129 = por %p127, %p128
      %p130 = scmp.ne.s32.totalorder %s121, %s122
      %p131 = scmp.eq.s32.totalorder %s36, 0
      %p132 = por %p130, %p131
      %p133 = scmp.ne.s32.totalorder %s121, %s122
      %p134 = scmp.eq.s32.totalorder %s37, 5
      %p135 = por %p133, %p134
      %p137 = scmp.ne.s32.totalorder %s122, %s136
      %p138 = scmp.eq.s32.totalorder %s37, 0
      %p139 = por %p137, %p138
      %s141 = sadd.s32 %s140, 1
      %p144 = scmp.eq.s32.totalorder %s31, 5
      %p145 = scmp.ne.s32.totalorder %s140, %s142
      %p146 = scmp.eq.s32.totalorder %s31, 0
      %p147 = por %p145, %p146
      %p148 = scmp.ne.s32.totalorder %s140, %s142
      %p149 = scmp.eq.s32.totalorder %s36, 5
      %p150 = por %p148, %p149
      %p151 = scmp.ne.s32.totalorder %s142, %s143
      %p152 = scmp.eq.s32.totalorder %s36, 0
      %p153 = por %p151, %p152
      %p154 = scmp.ne.s32.totalorder %s142, %s143
      %p155 = scmp.eq.s32.totalorder %s37, 5
      %p156 = por %p154, %p155
      %p158 = scmp.ne.s32.totalorder %s143, %s157
      %p159 = scmp.eq.s32.totalorder %s37, 0
      %p160 = por %p158, %p159
      %s161 = ssub.s32 %s39, %s46
      %p162 = scmp.eq.s32.totalorder %s161, 0
      %s164 = sadd.s32 %s163, 1
      %s165 = scalar_select %p162, %s163, %s164
      %p168 = pneg %p162
      %p169 = scmp.eq.s32.totalorder %s31, 5
      %p170 = por %p168, %p169
      %p171 = scmp.ne.s32.totalorder %s163, %s166
      %p172 = scmp.eq.s32.totalorder %s31, 0
      %p173 = por %p171, %p172
      %p174 = scmp.ne.s32.totalorder %s163, %s166
      %p175 = scmp.eq.s32.totalorder %s36, 5
      %p176 = por %p174, %p175
      %p177 = scmp.ne.s32.totalorder %s166, %s167
      %p178 = scmp.eq.s32.totalorder %s36, 0
      %p179 = por %p177, %p178
      %p180 = scmp.ne.s32.totalorder %s166, %s167
      %p181 = scmp.eq.s32.totalorder %s37, 5
      %p182 = por %p180, %p181
      %p184 = scmp.ne.s32.totalorder %s167, %s183
      %p185 = scmp.eq.s32.totalorder %s37, 0
      %p186 = por %p184, %p185
      %s187 = ssub.s32 %s39, %s46
      %p188 = scmp.eq.s32.totalorder %s187, 0
      %s190 = sadd.s32 %s189, 1
      %s191 = scalar_select %p188, %s189, %s190
      %p194 = pneg %p188
      %p195 = scmp.eq.s32.totalorder %s31, 5
      %p196 = por %p194, %p195
      %p197 = scmp.ne.s32.totalorder %s189, %s192
      %p198 = scmp.eq.s32.totalorder %s31, 0
      %p199 = por %p197, %p198
      %p200 = scmp.ne.s32.totalorder %s189, %s192
      %p201 = scmp.eq.s32.totalorder %s36, 5
      %p202 = por %p200, %p201
      %p203 = scmp.ne.s32.totalorder %s192, %s193
      %p204 = scmp.eq.s32.totalorder %s36, 0
      %p205 = por %p203, %p204
      %p206 = scmp.ne.s32.totalorder %s192, %s193
      %p207 = scmp.eq.s32.totalorder %s37, 5
      %p208 = por %p206, %p207
      %p210 = scmp.ne.s32.totalorder %s193, %s209
      %p211 = scmp.eq.s32.totalorder %s37, 0
      %p212 = por %p210, %p211
      %s214 = sadd.s32 %s213, 1
      %p217 = scmp.eq.s32.totalorder %s31, 5
      %p218 = scmp.ne.s32.totalorder %s213, %s215
      %p219 = scmp.eq.s32.totalorder %s31, 0
      %p220 = por %p218, %p219
      %p221 = scmp.ne.s32.totalorder %s213, %s215
      %p222 = scmp.eq.s32.totalorder %s36, 5
      %p223 = por %p221, %p222
      %p224 = scmp.ne.s32.totalorder %s215, %s216
      %p225 = scmp.eq.s32.totalorder %s36, 0
      %p226 = por %p224, %p225
      %p227 = scmp.ne.s32.totalorder %s215, %s216
      %p228 = scmp.eq.s32.totalorder %s37, 5
      %p229 = por %p227, %p228
      %p231 = scmp.ne.s32.totalorder %s216, %s230
      %p232 = scmp.eq.s32.totalorder %s37, 0
      %p233 = por %p231, %p232
      %s235 = sadd.s32 %s234, 1
      %p238 = scmp.eq.s32.totalorder %s31, 5
      %p239 = scmp.ne.s32.totalorder %s234, %s236
      %p240 = scmp.eq.s32.totalorder %s31, 0
      %p241 = por %p239, %p240
      %p242 = scmp.ne.s32.totalorder %s234, %s236
      %p243 = scmp.eq.s32.totalorder %s36, 5
      %p244 = por %p242, %p243
      %p245 = scmp.ne.s32.totalorder %s236, %s237
      %p246 = scmp.eq.s32.totalorder %s36, 0
      %p247 = por %p245, %p246
      %p248 = scmp.ne.s32.totalorder %s236, %s237
      %p249 = scmp.eq.s32.totalorder %s37, 5
      %p250 = por %p248, %p249
      %p252 = scmp.ne.s32.totalorder %s237, %s251
      %p253 = scmp.eq.s32.totalorder %s37, 0
      %p254 = por %p252, %p253
      %s256 = sadd.s32 %s255, 1
      %p259 = scmp.eq.s32.totalorder %s31, 5
      %p260 = scmp.ne.s32.totalorder %s255, %s257
      %p261 = scmp.eq.s32.totalorder %s31, 0
      %p262 = por %p260, %p261
      %p263 = scmp.ne.s32.totalorder %s255, %s257
      %p264 = scmp.eq.s32.totalorder %s36, 5
      %p265 = por %p263, %p264
      %p266 = scmp.ne.s32.totalorder %s257, %s258
      %p267 = scmp.eq.s32.totalorder %s36, 0
      %p268 = por %p266, %p267
      %p269 = scmp.ne.s32.totalorder %s257, %s258
      %p270 = scmp.eq.s32.totalorder %s37, 5
      %p271 = por %p269, %p270
      %p273 = scmp.ne.s32.totalorder %s258, %s272
      %p274 = scmp.eq.s32.totalorder %s37, 0
      %p275 = por %p273, %p274
      %s277 = sadd.s32 %s276, 1
      %p280 = scmp.eq.s32.totalorder %s31, 5
      %p281 = scmp.ne.s32.totalorder %s276, %s278
      %p282 = scmp.eq.s32.totalorder %s31, 0
      %p283 = por %p281, %p282
      %p284 = scmp.ne.s32.totalorder %s276, %s278
      %p285 = scmp.eq.s32.totalorder %s36, 5
      %p286 = por %p284, %p285
      %p287 = scmp.ne.s32.totalorder %s278, %s279
      %p288 = scmp.eq.s32.totalorder %s36, 0
      %p289 = por %p287, %p288
      %p290 = scmp.ne.s32.totalorder %s278, %s279
      %p291 = scmp.eq.s32.totalorder %s37, 5
      %p292 = por %p290, %p291
      %p294 = scmp.ne.s32.totalorder %s279, %s293
      %p295 = scmp.eq.s32.totalorder %s37, 0
      %p296 = por %p294, %p295
      %s297 = ssub.s32 %s38, %s50
      %p298 = scmp.eq.s32.totalorder %s297, 0
      %s300 = sadd.s32 %s299, 1
      %s301 = scalar_select %p298, %s299, %s300
      %p304 = pneg %p298
      %p305 = scmp.eq.s32.totalorder %s31, 5
      %p306 = por %p304, %p305
      %p307 = scmp.ne.s32.totalorder %s299, %s302
      %p308 = scmp.eq.s32.totalorder %s31, 0
      %p309 = por %p307, %p308
      %p310 = scmp.ne.s32.totalorder %s299, %s302
      %p311 = scmp.eq.s32.totalorder %s36, 5
      %p312 = por %p310, %p311
      %p313 = scmp.ne.s32.totalorder %s302, %s303
      %p314 = scmp.eq.s32.totalorder %s36, 0
      %p315 = por %p313, %p314
      %p316 = scmp.ne.s32.totalorder %s302, %s303
      %p317 = scmp.eq.s32.totalorder %s37, 5
      %p318 = por %p316, %p317
      %p320 = scmp.ne.s32.totalorder %s303, %s319
      %p321 = scmp.eq.s32.totalorder %s37, 0
      %p322 = por %p320, %p321
      %s323 = ssub.s32 %s38, %s50
      %p324 = scmp.eq.s32.totalorder %s323, 0
      %s326 = sadd.s32 %s325, 1
      %s327 = scalar_select %p324, %s325, %s326
      %p330 = pneg %p324
      %p331 = scmp.eq.s32.totalorder %s31, 5
      %p332 = por %p330, %p331
      %p333 = scmp.ne.s32.totalorder %s325, %s328
      %p334 = scmp.eq.s32.totalorder %s31, 0
      %p335 = por %p333, %p334
      %p336 = scmp.ne.s32.totalorder %s325, %s328
      %p337 = scmp.eq.s32.totalorder %s36, 5
      %p338 = por %p336, %p337
      %p339 = scmp.ne.s32.totalorder %s328, %s329
      %p340 = scmp.eq.s32.totalorder %s36, 0
      %p341 = por %p339, %p340
      %p342 = scmp.ne.s32.totalorder %s328, %s329
      %p343 = scmp.eq.s32.totalorder %s37, 5
      %p344 = por %p342, %p343
      %p346 = scmp.ne.s32.totalorder %s329, %s345
      %p347 = scmp.eq.s32.totalorder %s37, 0
      %p348 = por %p346, %p347
      %s349 = ssub.s32 %s38, %s50
      %p350 = scmp.eq.s32.totalorder %s349, 0
      %s352 = sadd.s32 %s351, 1
      %s353 = scalar_select %p350, %s351, %s352
      %p356 = pneg %p350
      %p357 = scmp.eq.s32.totalorder %s31, 5
      %p358 = por %p356, %p357
      %p359 = scmp.ne.s32.totalorder %s351, %s354
      %p360 = scmp.eq.s32.totalorder %s31, 0
      %p361 = por %p359, %p360
      %p362 = scmp.ne.s32.totalorder %s351, %s354
      %p363 = scmp.eq.s32.totalorder %s36, 5
      %p364 = por %p362, %p363
      %p365 = scmp.ne.s32.totalorder %s354, %s355
      %p366 = scmp.eq.s32.totalorder %s36, 0
      %p367 = por %p365, %p366
      %p368 = scmp.ne.s32.totalorder %s354, %s355
      %p369 = scmp.eq.s32.totalorder %s37, 5
      %p370 = por %p368, %p369
      %p372 = scmp.ne.s32.totalorder %s355, %s371
      %p373 = scmp.eq.s32.totalorder %s37, 0
      %p374 = por %p372, %p373
      %p375 = scmp.le.s32.totalorder 1, %s31
      %p376 = scmp.lt.s32.totalorder %s31, 7
      %p377 = pnand %p375, %p376
      %p378 = pneg %p377
      // Predicated region
      $region9: #{tpu_custom_call.1} parent=5 // pred_check
        _
      $region10: #{tpu_custom_call.1} parent=5 // pred_check_branch
        %380 = sbr.rel (%p377) target = $region12
      $region11: #{tpu_custom_call.1} parent=5 // pred_region
        %s381 = ssub.s32 %s31, 1
        // Predicated region
        $region13: #{tpu_custom_call.1} parent=11 // pred_check
          %p382 = pneg %p90
        $region14: #{tpu_custom_call.1} parent=11 // pred_check_branch
          %384 = sbr.rel (%p382) target = $region16
        $region15: #{tpu_custom_call.1} parent=11 // pred_region
          _
        $region16: #{tpu_custom_call.1} parent=11 // pred_fallthru
          _
        // Predicated region
        $region17: #{tpu_custom_call.1} parent=11 // pred_check
          %p385 = pneg %p111
        $region18: #{tpu_custom_call.1} parent=11 // pred_check_branch
          %387 = sbr.rel (%p385) target = $region20
        $region19: #{tpu_custom_call.1} parent=11 // pred_region
          _
        $region20: #{tpu_custom_call.1} parent=11 // pred_fallthru
          _
        // Predicated region
        $region21: #{tpu_custom_call.1} parent=11 // pred_check
          %p388 = pneg %p132
        $region22: #{tpu_custom_call.1} parent=11 // pred_check_branch
          %390 = sbr.rel (%p388) target = $region24
        $region23: #{tpu_custom_call.1} parent=11 // pred_region
          _
        $region24: #{tpu_custom_call.1} parent=11 // pred_fallthru
          _
        // Predicated region
        $region25: #{tpu_custom_call.1} parent=11 // pred_check
          %p391 = pneg %p153
        $region26: #{tpu_custom_call.1} parent=11 // pred_check_branch
          %393 = sbr.rel (%p391) target = $region28
        $region27: #{tpu_custom_call.1} parent=11 // pred_region
          _
        $region28: #{tpu_custom_call.1} parent=11 // pred_fallthru
          _
        // Predicated region
        $region29: #{tpu_custom_call.1} parent=11 // pred_check
          %p394 = pneg %p226
        $region30: #{tpu_custom_call.1} parent=11 // pred_check_branch
          %396 = sbr.rel (%p394) target = $region32
        $region31: #{tpu_custom_call.1} parent=11 // pred_region
          _
        $region32: #{tpu_custom_call.1} parent=11 // pred_fallthru
          _
        // Predicated region
        $region33: #{tpu_custom_call.1} parent=11 // pred_check
          %p397 = pneg %p247
        $region34: #{tpu_custom_call.1} parent=11 // pred_check_branch
          %399 = sbr.rel (%p397) target = $region36
        $region35: #{tpu_custom_call.1} parent=11 // pred_region
          _
        $region36: #{tpu_custom_call.1} parent=11 // pred_fallthru
          _
        // Predicated region
        $region37: #{tpu_custom_call.1} parent=11 // pred_check
          %p400 = pneg %p268
        $region38: #{tpu_custom_call.1} parent=11 // pred_check_branch
          %402 = sbr.rel (%p400) target = $region40
        $region39: #{tpu_custom_call.1} parent=11 // pred_region
          _
        $region40: #{tpu_custom_call.1} parent=11 // pred_fallthru
          _
        // Predicated region
        $region41: #{tpu_custom_call.1} parent=11 // pred_check
          %p403 = pneg %p289
        $region42: #{tpu_custom_call.1} parent=11 // pred_check_branch
          %405 = sbr.rel (%p403) target = $region44
        $region43: #{tpu_custom_call.1} parent=11 // pred_region
          _
        $region44: #{tpu_custom_call.1} parent=11 // pred_fallthru
          _
      $region12: #{tpu_custom_call.1} parent=5 // pred_fallthru
        _
      %p406 = scmp.lt.s32.totalorder %s31, 6
      // Predicated region
      $region45: #{tpu_custom_call.1} parent=5 // pred_check
        %p407 = pneg %p406
      $region46: #{tpu_custom_call.1} parent=5 // pred_check_branch
        %409 = sbr.rel (%p407) target = $region48
      $region47: #{tpu_custom_call.1} parent=5 // pred_region
        // Predicated region
        $region49: #{tpu_custom_call.1} parent=47 // pred_check
          %p410 = pneg %p63
        $region50: #{tpu_custom_call.1} parent=47 // pred_check_branch
          %412 = sbr.rel (%p410) target = $region52
        $region51: #{tpu_custom_call.1} parent=47 // pred_region
          %s413 = smul.u32 4, %s38
          %p414 = scmp.lt.s32.totalorder %s413, 7
          %s415 = scalar_select %p414, %s413, 7
          %s416 = smul.addr %s415, 2
          %s417 = smul.addr %s416, 8
          %s418 = scalar_lea.vmem %s0, %s417
          %s419 = smul.u32 4, %s38
        $region52: #{tpu_custom_call.1} parent=47 // pred_fallthru
          _
        // Predicated region
        $region53: #{tpu_custom_call.1} parent=47 // pred_check
          %p420 = pneg %p173
        $region54: #{tpu_custom_call.1} parent=47 // pred_check_branch
          %422 = sbr.rel (%p420) target = $region56
        $region55: #{tpu_custom_call.1} parent=47 // pred_region
          %s423 = sand.u32 %s163, 1
          %s424 = scalar_lea.sflag [#allocation5], %s423
          %s425 = sand.u32 %s163, 1
          %s426 = smul.addr %s425, 384
          %s427 = scalar_lea.vmem [#allocation4], %s426
          %429 = vsyncadd %s424, 0
          %s430 = smul.addr %s39, 96
          %s431 = smul.addr %s430, 4
          %s432 = scalar_lea.hbm %s5, %s431
          %s433 = sshll.u32 %s432, 4
          %s434 = int_to_ptr.hbm [resolvable:$true] %s433
          %s435 = sshll.u32 %s427, 4
          %s436 = int_to_ptr.vmem [resolvable:$true] %s435
          %441 = dma.hbm_to_vmem [thread:$0]  %s434, 6144, %s436, %s424, 128, 128, 8
        $region56: #{tpu_custom_call.1} parent=47 // pred_fallthru
          _
        // Predicated region
        $region57: #{tpu_custom_call.1} parent=47 // pred_check
          %p442 = pneg %p199
        $region58: #{tpu_custom_call.1} parent=47 // pred_check_branch
          %444 = sbr.rel (%p442) target = $region60
        $region59: #{tpu_custom_call.1} parent=47 // pred_region
          %p445 = scmp.lt.s32.totalorder %s39, 2
          %s446 = scalar_select %p445, %s39, 2
          %s447 = smul.addr %s446, 2
          %s448 = scalar_lea.vmem %s6, %s447
        $region60: #{tpu_custom_call.1} parent=47 // pred_fallthru
          _
      $region48: #{tpu_custom_call.1} parent=5 // pred_fallthru
        _
      %p449 = scmp.le.s32.totalorder 1, %s31
      %p450 = scmp.lt.s32.totalorder %s31, 7
      %p451 = pnand %p449, %p450
      %p452 = pneg %p451
      // Predicated region
      $region61: #{tpu_custom_call.1} parent=5 // pred_check
        _
      $region62: #{tpu_custom_call.1} parent=5 // pred_check_branch
        %454 = sbr.rel (%p451) target = $region64
      $region63: #{tpu_custom_call.1} parent=5 // pred_region
        %s455 = ssub.s32 %s31, 1
        %s456 = sand.u32 %s166, 1
        %s457 = scalar_lea.sflag [#allocation5], %s456
        %s458 = sand.u32 %s166, 1
        %s459 = smul.addr %s458, 384
        %s460 = scalar_lea.vmem [#allocation4], %s459
        // Predicated region
        $region65: #{tpu_custom_call.1} parent=63 // pred_check
          %p461 = pneg %p179
        $region66: #{tpu_custom_call.1} parent=63 // pred_check_branch
          %463 = sbr.rel (%p461) target = $region68
        $region67: #{tpu_custom_call.1} parent=63 // pred_region
          %465 = dma.done %s457, 6144
        $region68: #{tpu_custom_call.1} parent=63 // pred_fallthru
          _
        %s466 = smul.u32 4, %s40
        %p467 = scmp.lt.s32.totalorder %s466, 7
        %s468 = scalar_select %p467, %s466, 7
        %s469 = smul.addr %s468, 2
        %s470 = smul.addr %s469, 8
        %s471 = scalar_lea.vmem %s0, %s470
        %p472 = pneg %p69
        %p473 = pneg %p66
        %p474 = pneg %p90
        %p475 = pneg %p87
        %p476 = pneg %p111
        %p477 = pneg %p108
        %p478 = pneg %p132
        %p479 = pneg %p129
        %p480 = pneg %p153
        %p481 = pneg %p150
        %s482 = sand.u32 %s166, 1
        %s483 = scalar_lea.sflag [#allocation5], %s482
        %s484 = sand.u32 %s166, 1
        %s485 = smul.addr %s484, 384
        %s486 = scalar_lea.vmem [#allocation4], %s485
        %p487 = pneg %p179
        %p488 = pneg %p176
        %p489 = scmp.lt.s32.totalorder %s41, 2
        %s490 = scalar_select %p489, %s41, 2
        %s491 = smul.addr %s490, 2
        %s492 = scalar_lea.vmem %s6, %s491
        %p493 = pneg %p205
        %p494 = pneg %p202
        %p495 = pneg %p226
        %p496 = pneg %p223
        %p497 = pneg %p247
        %p498 = pneg %p244
        %p499 = pneg %p268
        %p500 = pneg %p265
        %p501 = pneg %p289
        %p502 = pneg %p286
        %p503 = pneg %p315
        %p504 = pneg %p312
        %p505 = scmp.lt.s32.totalorder %s40, 1
        %s506 = scalar_select %p505, %s40, 1
        %s507 = smul.addr %s506, 4
        %s508 = scalar_lea.vmem %s11, %s507
        %p509 = pneg %p341
        %p510 = pneg %p338
        %s511 = sand.u32 %s328, 1
        %s512 = scalar_lea.sflag [#allocation6], %s511
        %s513 = sand.u32 %s328, 1
        %s514 = smul.addr %s513, 64
        %s515 = scalar_lea.vmem [#allocation7], %s514
        %p516 = pneg %p367
        %p517 = pneg %p364
        %s518 = sand.u32 %s354, 1
        %s519 = scalar_lea.sflag [#allocation9], %s518
        %s520 = sand.u32 %s354, 1
        %s521 = smul.addr %s520, 64
        %s522 = scalar_lea.vmem [#allocation8], %s521
        %s523 = smul.u32 4, %s40
        %p524 = scmp.lt.s32.totalorder %s523, 7
        %s525 = scalar_select %p524, %s523, 7
        %s526 = smul.addr %s525, 2
        %s527 = smul.addr %s526, 8
        %s528 = scalar_lea.vmem %s0, %s527
        %s529 = smul.u32 4, %s40
        %p530 = scmp.lt.s32.totalorder %s41, 2
        %s531 = scalar_select %p530, %s41, 2
        %s532 = smul.addr %s531, 2
        %s533 = scalar_lea.vmem %s6, %s532
        %p534 = scmp.lt.s32.totalorder %s40, 1
        %s535 = scalar_select %p534, %s40, 1
        %s536 = smul.addr %s535, 4
        %s537 = scalar_lea.vmem %s11, %s536
        %s538 = smul.u32 4, %s40
        %s539 = smul.u32 4, %s40
        %p540 = scmp.eq.s32.totalorder %s41, 0
        // Predicated region
        $region69: #{tpu_custom_call.1} parent=63 // pred_check
          %p541 = pneg %p540
        $region70: #{tpu_custom_call.1} parent=63 // pred_check_branch
          %543 = sbr.rel (%p541) target = $region72
        $region71: #{tpu_custom_call.1} parent=63 // pred_region
          %v544 = vld [vmem:[%s528] sm:$0xff]
          %v545 = vld [vmem:[%s528 + $0x8] sm:$0xff]
          %v546 = vld [vmem:[%s528 + $0x10] sm:$0xff]
          %v547 = vld [vmem:[%s528 + $0x18] sm:$0xff]
          %v548 = vld [vmem:[%s528 + $0x20] sm:$0xff]
          %v549 = vld [vmem:[%s528 + $0x28] sm:$0xff]
          %v550 = vld [vmem:[%s528 + $0x30] sm:$0xff]
          %v551 = vld [vmem:[%s528 + $0x38] sm:$0xff]
          %v552 = vld [vmem:[%s1] sm:$0xff]
          %v553 = vld [vmem:[%s1 + $0x8] sm:$0xff]
          %v554 = vadd.f32 %v544, %v552
          %v555 = vadd.f32 %v545, %v553
          %v556 = vadd.f32 %v546, %v552
          %v557 = vadd.f32 %v547, %v553
          %v558 = vadd.f32 %v548, %v552
          %v559 = vadd.f32 %v549, %v553
          %v560 = vadd.f32 %v550, %v552
          %v561 = vadd.f32 %v551, %v553
          %562 = vst [vmem:[%s522] sm:$0xff] %v554
          %563 = vst [vmem:[%s522 + $0x8] sm:$0xff] %v555
          %564 = vst [vmem:[%s522 + $0x10] sm:$0xff] %v556
          %565 = vst [vmem:[%s522 + $0x18] sm:$0xff] %v557
          %566 = vst [vmem:[%s522 + $0x20] sm:$0xff] %v558
          %567 = vst [vmem:[%s522 + $0x28] sm:$0xff] %v559
          %568 = vst [vmem:[%s522 + $0x30] sm:$0xff] %v560
          %569 = vst [vmem:[%s522 + $0x38] sm:$0xff] %v561
          %v570 = vpack.c.bf16 %v555, %v554
          %v571 = vpack.c.bf16 %v557, %v556
          %v572 = vpack.c.bf16 %v559, %v558
          %v573 = vpack.c.bf16 %v561, %v560
          %v574 = vld [vmem:[%s3] sm:$0xf]
          %v575 = vld [vmem:[%s3 + $0x4] sm:$0xf]
          %v576 = vld [vmem:[%s3 + $0x8] sm:$0xf]
          %v577 = vld [vmem:[%s3 + $0xc] sm:$0xf]
          %v578 = vld [vmem:[%s3 + $0x10] sm:$0xf]
          %v579 = vld [vmem:[%s3 + $0x14] sm:$0xf]
          %v580 = vld [vmem:[%s3 + $0x18] sm:$0xf]
          %v581 = vld [vmem:[%s3 + $0x1c] sm:$0xf]
          %v582 = vld [vmem:[%s3 + $0x20] sm:$0xf]
          %v583 = vld [vmem:[%s3 + $0x24] sm:$0xf]
          %v584 = vld [vmem:[%s3 + $0x28] sm:$0xf]
          %v585 = vld [vmem:[%s3 + $0x2c] sm:$0xf]
          %v586 = vld [vmem:[%s3 + $0x30] sm:$0xf]
          %v587 = vld [vmem:[%s3 + $0x34] sm:$0xf]
          %v588 = vld [vmem:[%s3 + $0x38] sm:$0xf]
          %v589 = vld [vmem:[%s3 + $0x3c] sm:$0xf]
          %v590 = vld [vmem:[%s4] sm:$0x1]
          %v592 = vperm.slane %v590, 0
          %v610 = vunpack.c.l.b16 %v574
          %v611 = vunpack.c.l.b16 %v575
          %v612 = vunpack.c.l.b16 %v576
          %v613 = vunpack.c.l.b16 %v577
          %v614 = vunpack.c.l.b16 %v578
          %v615 = vunpack.c.l.b16 %v579
          %v616 = vunpack.c.l.b16 %v580
          %v617 = vunpack.c.l.b16 %v581
          %v618 = vunpack.c.l.b16 %v582
          %v619 = vunpack.c.l.b16 %v583
          %v620 = vunpack.c.l.b16 %v584
          %v621 = vunpack.c.l.b16 %v585
          %v622 = vunpack.c.l.b16 %v586
          %v623 = vunpack.c.l.b16 %v587
          %v624 = vunpack.c.l.b16 %v588
          %v625 = vunpack.c.l.b16 %v589
          %v626 = vpack.c.b16 %v611, %v610
          %v627 = vpack.c.b16 %v613, %v612
          %v628 = vpack.c.b16 %v615, %v614
          %v629 = vpack.c.b16 %v617, %v616
          %v630 = vpack.c.b16 %v619, %v618
          %v631 = vpack.c.b16 %v621, %v620
          %v632 = vpack.c.b16 %v623, %v622
          %v633 = vpack.c.b16 %v625, %v624
          %642 = vmatpush.bf16.msra.mxu0 %v633
          %643 = vmatpush.bf16.msra.mxu0 %v632
          %644 = vmatpush.bf16.msra.mxu0 %v631
          %645 = vmatpush.bf16.msra.mxu0 %v630
          %646 = vmatpush.bf16.msra.mxu0 %v629
          %647 = vmatpush.bf16.msra.mxu0 %v628
          %648 = vmatpush.bf16.msra.mxu0 %v627
          %649 = vmatpush.bf16.msra.mxu0 %v626
          %650 = vmatmul.bf16.gmra.mxu0 %v570
          %v651 = vpop.f32.mrf.mxu0
          %v652 = vadd.f32 %v592, %v651
          %v653 = vpop.f32.mrf.mxu0
          %v654 = vadd.f32 %v592, %v653
          %655 = vmatmul.bf16.gmra.mxu0 %v571
          %v656 = vpop.f32.mrf.mxu0
          %v657 = vadd.f32 %v592, %v656
          %v658 = vpop.f32.mrf.mxu0
          %v659 = vadd.f32 %v592, %v658
          %660 = vmatmul.bf16.gmra.mxu0 %v572
          %v661 = vpop.f32.mrf.mxu0
          %v662 = vadd.f32 %v592, %v661
          %v663 = vpop.f32.mrf.mxu0
          %v664 = vadd.f32 %v592, %v663
          %665 = vmatmul.bf16.gmra.mxu0 %v573
          %v666 = vpop.f32.mrf.mxu0
          %v667 = vadd.f32 %v592, %v666
          %v668 = vpop.f32.mrf.mxu0
          %v669 = vadd.f32 %v592, %v668
          %670 = vdwg.mxu0
          %v671 = vtanh.pop %v652
          %v672 = vtanh.pop %v654
          %v673 = vtanh.pop %v657
          %v674 = vtanh.pop %v659
          %v675 = vtanh.pop %v662
          %v676 = vtanh.pop %v664
          %v677 = vtanh.pop %v667
          %v678 = vtanh.pop %v669
          %679 = vst [vmem:[#allocation2] sm:$0xff] %v671
          %680 = vst [vmem:[#allocation2 + $0x8] sm:$0xff] %v672
          %681 = vst [vmem:[#allocation2 + $0x10] sm:$0xff] %v673
          %682 = vst [vmem:[#allocation2 + $0x18] sm:$0xff] %v674
          %683 = vst [vmem:[#allocation2 + $0x20] sm:$0xff] %v675
          %684 = vst [vmem:[#allocation2 + $0x28] sm:$0xff] %v676
          %685 = vst [vmem:[#allocation2 + $0x30] sm:$0xff] %v677
          %686 = vst [vmem:[#allocation2 + $0x38] sm:$0xff] %v678
        $region72: #{tpu_custom_call.1} parent=63 // pred_fallthru
          _
        %v687 = vld [vmem:[#allocation2] sm:$0xff]
        %v688 = vld [vmem:[#allocation2 + $0x8] sm:$0xff]
        %v689 = vld [vmem:[#allocation2 + $0x10] sm:$0xff]
        %v690 = vld [vmem:[#allocation2 + $0x18] sm:$0xff]
        %v691 = vld [vmem:[#allocation2 + $0x20] sm:$0xff]
        %v692 = vld [vmem:[#allocation2 + $0x28] sm:$0xff]
        %v693 = vld [vmem:[#allocation2 + $0x30] sm:$0xff]
        %v694 = vld [vmem:[#allocation2 + $0x38] sm:$0xff]
        %v695 = vrot.slane %v687, 7
        %v696 = vrot.slane %v688, 7
        %v697 = vrot.slane %v689, 7
        %v698 = vrot.slane %v690, 7
        %v699 = vrot.slane %v691, 7
        %v700 = vrot.slane %v692, 7
        %v701 = vrot.slane %v693, 7
        %v702 = vrot.slane %v694, 7
        %v703 = vlaneseq
        %v704 = vshrl.u32 %v703, 7
        %vm705 = vcmp.lt.s32.totalorder %v704, 1
        %v706 = vsel %vm705, %v701, %v702
        %v707 = vsel %vm705, %v700, %v701
        %v708 = vsel %vm705, %v699, %v700
        %v709 = vsel %vm705, %v698, %v699
        %v710 = vsel %vm705, %v697, %v698
        %v711 = vsel %vm705, %v696, %v697
        %v712 = vsel %vm705, %v695, %v696
        %v713 = vsel %vm705, %v702, %v695
        %v714 = vld [vmem:[%s2] sm:$0xff]
        %v715 = vld [vmem:[%s2 + $0x8] sm:$0xff]
        %v716 = vld [vmem:[%s2 + $0x10] sm:$0xff]
        %v717 = vld [vmem:[%s2 + $0x18] sm:$0xff]
        %v718 = vld [vmem:[%s2 + $0x20] sm:$0xff]
        %v719 = vld [vmem:[%s2 + $0x28] sm:$0xff]
        %v720 = vld [vmem:[%s2 + $0x30] sm:$0xff]
        %v721 = vld [vmem:[%s2 + $0x38] sm:$0xff]
        %723 = vset.pattern.permute.xlu0 0
        %724 = vperm.xlu0 %723, %v714
        %v725 = vpop.permute.xlu0 %724
        %728 = vset.pattern.permute.xlu0 0
        %729 = vperm.xlu0 %728, %v715
        %v730 = vpop.permute.xlu0 %729
        %733 = vset.pattern.permute.xlu0 0
        %734 = vperm.xlu0 %733, %v716
        %v735 = vpop.permute.xlu0 %734
        %738 = vset.pattern.permute.xlu0 0
        %739 = vperm.xlu0 %738, %v717
        %v740 = vpop.permute.xlu0 %739
        %743 = vset.pattern.permute.xlu0 0
        %744 = vperm.xlu0 %743, %v718
        %v745 = vpop.permute.xlu0 %744
        %748 = vset.pattern.permute.xlu0 0
        %749 = vperm.xlu0 %748, %v719
        %v750 = vpop.permute.xlu0 %749
        %753 = vset.pattern.permute.xlu0 0
        %754 = vperm.xlu0 %753, %v720
        %v755 = vpop.permute.xlu0 %754
        %758 = vset.pattern.permute.xlu0 0
        %759 = vperm.xlu0 %758, %v721
        %v760 = vpop.permute.xlu0 %759
        %v762 = vmul.f32 %v713, %v725
        %v763 = vmul.f32 %v712, %v730
        %v764 = vmul.f32 %v711, %v735
        %v765 = vmul.f32 %v710, %v740
        %v766 = vmul.f32 %v709, %v745
        %v767 = vmul.f32 %v708, %v750
        %v768 = vmul.f32 %v707, %v755
        %v769 = vmul.f32 %v706, %v760
        %v770 = vpack.c.bf16 %v763, %v762
        %v771 = vpack.c.bf16 %v765, %v764
        %v772 = vpack.c.bf16 %v767, %v766
        %v773 = vpack.c.bf16 %v769, %v768
        %v774 = vld [vmem:[%s460] sm:$0xff]
        %v775 = vld [vmem:[%s460 + $0x8] sm:$0xff]
        %v776 = vld [vmem:[%s460 + $0x10] sm:$0xff]
        %v777 = vld [vmem:[%s460 + $0x18] sm:$0xff]
        %v778 = vld [vmem:[%s460 + $0x20] sm:$0xff]
        %v779 = vld [vmem:[%s460 + $0x28] sm:$0xff]
        %v780 = vld [vmem:[%s460 + $0x30] sm:$0xff]
        %v781 = vld [vmem:[%s460 + $0x38] sm:$0xff]
        %v782 = vld [vmem:[%s460 + $0x40] sm:$0xff]
        %v783 = vld [vmem:[%s460 + $0x48] sm:$0xff]
        %v784 = vld [vmem:[%s460 + $0x50] sm:$0xff]
        %v785 = vld [vmem:[%s460 + $0x58] sm:$0xff]
        %v786 = vld [vmem:[%s460 + $0x60] sm:$0xff]
        %v787 = vld [vmem:[%s460 + $0x68] sm:$0xff]
        %v788 = vld [vmem:[%s460 + $0x70] sm:$0xff]
        %v789 = vld [vmem:[%s460 + $0x78] sm:$0xff]
        %v790 = vld [vmem:[%s533] sm:$0x3]
        %v792 = vperm.slane %v790, 0
        %v793 = vperm.slane %v790, 1
        %v812 = vunpack.c.l.b16 %v774
        %v813 = vunpack.c.h.b16 %v774
        %v814 = vunpack.c.l.b16 %v775
        %v815 = vunpack.c.h.b16 %v775
        %v816 = vunpack.c.l.b16 %v776
        %v817 = vunpack.c.h.b16 %v776
        %v818 = vunpack.c.l.b16 %v777
        %v819 = vunpack.c.h.b16 %v777
        %v820 = vunpack.c.l.b16 %v778
        %v821 = vunpack.c.h.b16 %v778
        %v822 = vunpack.c.l.b16 %v779
        %v823 = vunpack.c.h.b16 %v779
        %v824 = vunpack.c.l.b16 %v780
        %v825 = vunpack.c.h.b16 %v780
        %v826 = vunpack.c.l.b16 %v781
        %v827 = vunpack.c.h.b16 %v781
        %v828 = vunpack.c.l.b16 %v782
        %v829 = vunpack.c.h.b16 %v782
        %v830 = vunpack.c.l.b16 %v783
        %v831 = vunpack.c.h.b16 %v783
        %v832 = vunpack.c.l.b16 %v784
        %v833 = vunpack.c.h.b16 %v784
        %v834 = vunpack.c.l.b16 %v785
        %v835 = vunpack.c.h.b16 %v785
        %v836 = vunpack.c.l.b16 %v786
        %v837 = vunpack.c.h.b16 %v786
        %v838 = vunpack.c.l.b16 %v787
        %v839 = vunpack.c.h.b16 %v787
        %v840 = vunpack.c.l.b16 %v788
        %v841 = vunpack.c.h.b16 %v788
        %v842 = vunpack.c.l.b16 %v789
        %v843 = vunpack.c.h.b16 %v789
        %v844 = vpack.c.b16 %v814, %v812
        %v845 = vpack.c.b16 %v815, %v813
        %v846 = vpack.c.b16 %v818, %v816
        %v847 = vpack.c.b16 %v819, %v817
        %v848 = vpack.c.b16 %v822, %v820
        %v849 = vpack.c.b16 %v823, %v821
        %v850 = vpack.c.b16 %v826, %v824
        %v851 = vpack.c.b16 %v827, %v825
        %v852 = vpack.c.b16 %v830, %v828
        %v853 = vpack.c.b16 %v831, %v829
        %v854 = vpack.c.b16 %v834, %v832
        %v855 = vpack.c.b16 %v835, %v833
        %v856 = vpack.c.b16 %v838, %v836
        %v857 = vpack.c.b16 %v839, %v837
        %v858 = vpack.c.b16 %v842, %v840
        %v859 = vpack.c.b16 %v843, %v841
        %876 = vmatpush.bf16.msra.mxu0 %v858
        %877 = vmatpush.bf16.msra.mxu0 %v856
        %878 = vmatpush.bf16.msra.mxu0 %v854
        %879 = vmatpush.bf16.msra.mxu0 %v852
        %880 = vmatpush.bf16.msra.mxu0 %v850
        %881 = vmatpush.bf16.msra.mxu0 %v848
        %882 = vmatpush.bf16.msra.mxu0 %v846
        %883 = vmatpush.bf16.msra.mxu0 %v844
        %884 = vmatmul.bf16.gmra.mxu0 %v770
        %v885 = vpop.f32.mrf.mxu0
        %v886 = vadd.f32 %v792, %v885
        %v887 = vpop.f32.mrf.mxu0
        %v888 = vadd.f32 %v792, %v887
        %889 = vmatmul.bf16.gmra.mxu0 %v771
        %v890 = vpop.f32.mrf.mxu0
        %v891 = vadd.f32 %v792, %v890
        %v892 = vpop.f32.mrf.mxu0
        %v893 = vadd.f32 %v792, %v892
        %894 = vmatmul.bf16.gmra.mxu0 %v772
        %v895 = vpop.f32.mrf.mxu0
        %v896 = vadd.f32 %v792, %v895
        %v897 = vpop.f32.mrf.mxu0
        %v898 = vadd.f32 %v792, %v897
        %899 = vmatmul.bf16.gmra.mxu0 %v773
        %v900 = vpop.f32.mrf.mxu0
        %v901 = vadd.f32 %v792, %v900
        %v902 = vpop.f32.mrf.mxu0
        %v903 = vadd.f32 %v792, %v902
        %904 = vdwg.mxu0
        %905 = vmatpush.bf16.msra.mxu0 %v859
        %906 = vmatpush.bf16.msra.mxu0 %v857
        %907 = vmatpush.bf16.msra.mxu0 %v855
        %908 = vmatpush.bf16.msra.mxu0 %v853
        %909 = vmatpush.bf16.msra.mxu0 %v851
        %910 = vmatpush.bf16.msra.mxu0 %v849
        %911 = vmatpush.bf16.msra.mxu0 %v847
        %912 = vmatpush.bf16.msra.mxu0 %v845
        %913 = vmatmul.bf16.gmra.mxu0 %v770
        %v914 = vpop.f32.mrf.mxu0
        %v915 = vadd.f32 %v793, %v914
        %v916 = vpop.f32.mrf.mxu0
        %v917 = vadd.f32 %v793, %v916
        %918 = vmatmul.bf16.gmra.mxu0 %v771
        %v919 = vpop.f32.mrf.mxu0
        %v920 = vadd.f32 %v793, %v919
        %v921 = vpop.f32.mrf.mxu0
        %v922 = vadd.f32 %v793, %v921
        %923 = vmatmul.bf16.gmra.mxu0 %v772
        %v924 = vpop.f32.mrf.mxu0
        %v925 = vadd.f32 %v793, %v924
        %v926 = vpop.f32.mrf.mxu0
        %v927 = vadd.f32 %v793, %v926
        %928 = vmatmul.bf16.gmra.mxu0 %v773
        %v929 = vpop.f32.mrf.mxu0
        %v930 = vadd.f32 %v793, %v929
        %v931 = vpop.f32.mrf.mxu0
        %v932 = vadd.f32 %v793, %v931
        %933 = vdwg.mxu0
        %v934 = vpack.c.bf16 %v688, %v687
        %v935 = vpack.c.bf16 %v690, %v689
        %v936 = vpack.c.bf16 %v692, %v691
        %v937 = vpack.c.bf16 %v694, %v693
        %s938 = scalar_lea.vmem %s460, 128 [#allocation4]
        %v939 = vld [vmem:[%s938] sm:$0xff]
        %v940 = vld [vmem:[%s938 + $0x8] sm:$0xff]
        %v941 = vld [vmem:[%s938 + $0x10] sm:$0xff]
        %v942 = vld [vmem:[%s938 + $0x18] sm:$0xff]
        %v943 = vld [vmem:[%s938 + $0x20] sm:$0xff]
        %v944 = vld [vmem:[%s938 + $0x28] sm:$0xff]
        %v945 = vld [vmem:[%s938 + $0x30] sm:$0xff]
        %v946 = vld [vmem:[%s938 + $0x38] sm:$0xff]
        %v947 = vld [vmem:[%s938 + $0x40] sm:$0xff]
        %v948 = vld [vmem:[%s938 + $0x48] sm:$0xff]
        %v949 = vld [vmem:[%s938 + $0x50] sm:$0xff]
        %v950 = vld [vmem:[%s938 + $0x58] sm:$0xff]
        %v951 = vld [vmem:[%s938 + $0x60] sm:$0xff]
        %v952 = vld [vmem:[%s938 + $0x68] sm:$0xff]
        %v953 = vld [vmem:[%s938 + $0x70] sm:$0xff]
        %v954 = vld [vmem:[%s938 + $0x78] sm:$0xff]
        %v971 = vunpack.c.l.b16 %v939
        %v972 = vunpack.c.h.b16 %v939
        %v973 = vunpack.c.l.b16 %v940
        %v974 = vunpack.c.h.b16 %v940
        %v975 = vunpack.c.l.b16 %v941
        %v976 = vunpack.c.h.b16 %v941
        %v977 = vunpack.c.l.b16 %v942
        %v978 = vunpack.c.h.b16 %v942
        %v979 = vunpack.c.l.b16 %v943
        %v980 = vunpack.c.h.b16 %v943
        %v981 = vunpack.c.l.b16 %v944
        %v982 = vunpack.c.h.b16 %v944
        %v983 = vunpack.c.l.b16 %v945
        %v984 = vunpack.c.h.b16 %v945
        %v985 = vunpack.c.l.b16 %v946
        %v986 = vunpack.c.h.b16 %v946
        %v987 = vunpack.c.l.b16 %v947
        %v988 = vunpack.c.h.b16 %v947
        %v989 = vunpack.c.l.b16 %v948
        %v990 = vunpack.c.h.b16 %v948
        %v991 = vunpack.c.l.b16 %v949
        %v992 = vunpack.c.h.b16 %v949
        %v993 = vunpack.c.l.b16 %v950
        %v994 = vunpack.c.h.b16 %v950
        %v995 = vunpack.c.l.b16 %v951
        %v996 = vunpack.c.h.b16 %v951
        %v997 = vunpack.c.l.b16 %v952
        %v998 = vunpack.c.h.b16 %v952
        %v999 = vunpack.c.l.b16 %v953
        %v1000 = vunpack.c.h.b16 %v953
        %v1001 = vunpack.c.l.b16 %v954
        %v1002 = vunpack.c.h.b16 %v954
        %v1003 = vpack.c.b16 %v973, %v971
        %v1004 = vpack.c.b16 %v974, %v972
        %v1005 = vpack.c.b16 %v977, %v975
        %v1006 = vpack.c.b16 %v978, %v976
        %v1007 = vpack.c.b16 %v981, %v979
        %v1008 = vpack.c.b16 %v982, %v980
        %v1009 = vpack.c.b16 %v985, %v983
        %v1010 = vpack.c.b16 %v986, %v984
        %v1011 = vpack.c.b16 %v989, %v987
        %v1012 = vpack.c.b16 %v990, %v988
        %v1013 = vpack.c.b16 %v993, %v991
        %v1014 = vpack.c.b16 %v994, %v992
        %v1015 = vpack.c.b16 %v997, %v995
        %v1016 = vpack.c.b16 %v998, %v996
        %v1017 = vpack.c.b16 %v1001, %v999
        %v1018 = vpack.c.b16 %v1002, %v1000
        %1035 = vmatpush.bf16.msra.mxu0 %v1017
        %1036 = vmatpush.bf16.msra.mxu0 %v1015
        %1037 = vmatpush.bf16.msra.mxu0 %v1013
        %1038 = vmatpush.bf16.msra.mxu0 %v1011
        %1039 = vmatpush.bf16.msra.mxu0 %v1009
        %1040 = vmatpush.bf16.msra.mxu0 %v1007
        %1041 = vmatpush.bf16.msra.mxu0 %v1005
        %1042 = vmatpush.bf16.msra.mxu0 %v1003
        %1043 = vmatmul.bf16.gmra.mxu0 %v934
        %v1044 = vpop.f32.mrf.mxu0
        %v1045 = vadd.f32 0.0, %v1044
        %v1046 = vpop.f32.mrf.mxu0
        %v1047 = vadd.f32 0.0, %v1046
        %1048 = vmatmul.bf16.gmra.mxu0 %v935
        %v1049 = vpop.f32.mrf.mxu0
        %v1050 = vadd.f32 0.0, %v1049
        %v1051 = vpop.f32.mrf.mxu0
        %v1052 = vadd.f32 0.0, %v1051
        %1053 = vmatmul.bf16.gmra.mxu0 %v936
        %v1054 = vpop.f32.mrf.mxu0
        %v1055 = vadd.f32 0.0, %v1054
        %v1056 = vpop.f32.mrf.mxu0
        %v1057 = vadd.f32 0.0, %v1056
        %1058 = vmatmul.bf16.gmra.mxu0 %v937
        %v1059 = vpop.f32.mrf.mxu0
        %v1060 = vadd.f32 0.0, %v1059
        %v1061 = vpop.f32.mrf.mxu0
        %v1062 = vadd.f32 0.0, %v1061
        %1063 = vdwg.mxu0
        %1064 = vmatpush.bf16.msra.mxu0 %v1018
        %1065 = vmatpush.bf16.msra.mxu0 %v1016
        %1066 = vmatpush.bf16.msra.mxu0 %v1014
        %1067 = vmatpush.bf16.msra.mxu0 %v1012
        %1068 = vmatpush.bf16.msra.mxu0 %v1010
        %1069 = vmatpush.bf16.msra.mxu0 %v1008
        %1070 = vmatpush.bf16.msra.mxu0 %v1006
        %1071 = vmatpush.bf16.msra.mxu0 %v1004
        %1072 = vmatmul.bf16.gmra.mxu0 %v934
        %v1073 = vpop.f32.mrf.mxu0
        %v1074 = vadd.f32 0.0, %v1073
        %v1075 = vpop.f32.mrf.mxu0
        %v1076 = vadd.f32 0.0, %v1075
        %1077 = vmatmul.bf16.gmra.mxu0 %v935
        %v1078 = vpop.f32.mrf.mxu0
        %v1079 = vadd.f32 0.0, %v1078
        %v1080 = vpop.f32.mrf.mxu0
        %v1081 = vadd.f32 0.0, %v1080
        %1082 = vmatmul.bf16.gmra.mxu0 %v936
        %v1083 = vpop.f32.mrf.mxu0
        %v1084 = vadd.f32 0.0, %v1083
        %v1085 = vpop.f32.mrf.mxu0
        %v1086 = vadd.f32 0.0, %v1085
        %1087 = vmatmul.bf16.gmra.mxu0 %v937
        %v1088 = vpop.f32.mrf.mxu0
        %v1089 = vadd.f32 0.0, %v1088
        %v1090 = vpop.f32.mrf.mxu0
        %v1091 = vadd.f32 0.0, %v1090
        %1092 = vdwg.mxu0
        %v1093 = vadd.f32 %v886, %v1045
        %v1094 = vadd.f32 %v915, %v1074
        %v1095 = vadd.f32 %v888, %v1047
        %v1096 = vadd.f32 %v917, %v1076
        %v1097 = vadd.f32 %v891, %v1050
        %v1098 = vadd.f32 %v920, %v1079
        %v1099 = vadd.f32 %v893, %v1052
        %v1100 = vadd.f32 %v922, %v1081
        %v1101 = vadd.f32 %v896, %v1055
        %v1102 = vadd.f32 %v925, %v1084
        %v1103 = vadd.f32 %v898, %v1057
        %v1104 = vadd.f32 %v927, %v1086
        %v1105 = vadd.f32 %v901, %v1060
        %v1106 = vadd.f32 %v930, %v1089
        %v1107 = vadd.f32 %v903, %v1062
        %v1108 = vadd.f32 %v932, %v1091
        %v1109 = vrot.slane %v687, 1
        %v1110 = vrot.slane %v688, 1
        %v1111 = vrot.slane %v689, 1
        %v1112 = vrot.slane %v690, 1
        %v1113 = vrot.slane %v691, 1
        %v1114 = vrot.slane %v692, 1
        %v1115 = vrot.slane %v693, 1
        %v1116 = vrot.slane %v694, 1
        %vm1117 = vcmp.lt.s32.totalorder %v704, 7
        %v1118 = vsel %vm1117, %v1115, %v1116
        %v1119 = vsel %vm1117, %v1114, %v1115
        %v1120 = vsel %vm1117, %v1113, %v1114
        %v1121 = vsel %vm1117, %v1112, %v1113
        %v1122 = vsel %vm1117, %v1111, %v1112
        %v1123 = vsel %vm1117, %v1110, %v1111
        %v1124 = vsel %vm1117, %v1109, %v1110
        %v1125 = vsel %vm1117, %v1116, %v1109
        %s1126 = scalar_lea.vmem %s2, 128
        %v1127 = vld [vmem:[%s1126] sm:$0xff]
        %v1128 = vld [vmem:[%s1126 + $0x8] sm:$0xff]
        %v1129 = vld [vmem:[%s1126 + $0x10] sm:$0xff]
        %v1130 = vld [vmem:[%s1126 + $0x18] sm:$0xff]
        %v1131 = vld [vmem:[%s1126 + $0x20] sm:$0xff]
        %v1132 = vld [vmem:[%s1126 + $0x28] sm:$0xff]
        %v1133 = vld [vmem:[%s1126 + $0x30] sm:$0xff]
        %v1134 = vld [vmem:[%s1126 + $0x38] sm:$0xff]
        %1136 = vset.pattern.permute.xlu0 0
        %1137 = vperm.xlu0 %1136, %v1127
        %v1138 = vpop.permute.xlu0 %1137
        %1141 = vset.pattern.permute.xlu0 0
        %1142 = vperm.xlu0 %1141, %v1128
        %v1143 = vpop.permute.xlu0 %1142
        %1146 = vset.pattern.permute.xlu0 0
        %1147 = vperm.xlu0 %1146, %v1129
        %v1148 = vpop.permute.xlu0 %1147
        %1151 = vset.pattern.permute.xlu0 0
        %1152 = vperm.xlu0 %1151, %v1130
        %v1153 = vpop.permute.xlu0 %1152
        %1156 = vset.pattern.permute.xlu0 0
        %1157 = vperm.xlu0 %1156, %v1131
        %v1158 = vpop.permute.xlu0 %1157
        %1161 = vset.pattern.permute.xlu0 0
        %1162 = vperm.xlu0 %1161, %v1132
        %v1163 = vpop.permute.xlu0 %1162
        %1166 = vset.pattern.permute.xlu0 0
        %1167 = vperm.xlu0 %1166, %v1133
        %v1168 = vpop.permute.xlu0 %1167
        %1171 = vset.pattern.permute.xlu0 0
        %1172 = vperm.xlu0 %1171, %v1134
        %v1173 = vpop.permute.xlu0 %1172
        %v1175 = vmul.f32 %v1124, %v1138
        %v1176 = vmul.f32 %v1123, %v1143
        %v1177 = vmul.f32 %v1122, %v1148
        %v1178 = vmul.f32 %v1121, %v1153
        %v1179 = vmul.f32 %v1120, %v1158
        %v1180 = vmul.f32 %v1119, %v1163
        %v1181 = vmul.f32 %v1118, %v1168
        %v1182 = vmul.f32 %v1125, %v1173
        %v1183 = vpack.c.bf16 %v1176, %v1175
        %v1184 = vpack.c.bf16 %v1178, %v1177
        %v1185 = vpack.c.bf16 %v1180, %v1179
        %v1186 = vpack.c.bf16 %v1182, %v1181
        %s1187 = scalar_lea.vmem %s460, 256 [#allocation4]
        %v1188 = vld [vmem:[%s1187] sm:$0xff]
        %v1189 = vld [vmem:[%s1187 + $0x8] sm:$0xff]
        %v1190 = vld [vmem:[%s1187 + $0x10] sm:$0xff]
        %v1191 = vld [vmem:[%s1187 + $0x18] sm:$0xff]
        %v1192 = vld [vmem:[%s1187 + $0x20] sm:$0xff]
        %v1193 = vld [vmem:[%s1187 + $0x28] sm:$0xff]
        %v1194 = vld [vmem:[%s1187 + $0x30] sm:$0xff]
        %v1195 = vld [vmem:[%s1187 + $0x38] sm:$0xff]
        %v1196 = vld [vmem:[%s1187 + $0x40] sm:$0xff]
        %v1197 = vld [vmem:[%s1187 + $0x48] sm:$0xff]
        %v1198 = vld [vmem:[%s1187 + $0x50] sm:$0xff]
        %v1199 = vld [vmem:[%s1187 + $0x58] sm:$0xff]
        %v1200 = vld [vmem:[%s1187 + $0x60] sm:$0xff]
        %v1201 = vld [vmem:[%s1187 + $0x68] sm:$0xff]
        %v1202 = vld [vmem:[%s1187 + $0x70] sm:$0xff]
        %v1203 = vld [vmem:[%s1187 + $0x78] sm:$0xff]
        %v1220 = vunpack.c.l.b16 %v1188
        %v1221 = vunpack.c.h.b16 %v1188
        %v1222 = vunpack.c.l.b16 %v1189
        %v1223 = vunpack.c.h.b16 %v1189
        %v1224 = vunpack.c.l.b16 %v1190
        %v1225 = vunpack.c.h.b16 %v1190
        %v1226 = vunpack.c.l.b16 %v1191
        %v1227 = vunpack.c.h.b16 %v1191
        %v1228 = vunpack.c.l.b16 %v1192
        %v1229 = vunpack.c.h.b16 %v1192
        %v1230 = vunpack.c.l.b16 %v1193
        %v1231 = vunpack.c.h.b16 %v1193
        %v1232 = vunpack.c.l.b16 %v1194
        %v1233 = vunpack.c.h.b16 %v1194
        %v1234 = vunpack.c.l.b16 %v1195
        %v1235 = vunpack.c.h.b16 %v1195
        %v1236 = vunpack.c.l.b16 %v1196
        %v1237 = vunpack.c.h.b16 %v1196
        %v1238 = vunpack.c.l.b16 %v1197
        %v1239 = vunpack.c.h.b16 %v1197
        %v1240 = vunpack.c.l.b16 %v1198
        %v1241 = vunpack.c.h.b16 %v1198
        %v1242 = vunpack.c.l.b16 %v1199
        %v1243 = vunpack.c.h.b16 %v1199
        %v1244 = vunpack.c.l.b16 %v1200
        %v1245 = vunpack.c.h.b16 %v1200
        %v1246 = vunpack.c.l.b16 %v1201
        %v1247 = vunpack.c.h.b16 %v1201
        %v1248 = vunpack.c.l.b16 %v1202
        %v1249 = vunpack.c.h.b16 %v1202
        %v1250 = vunpack.c.l.b16 %v1203
        %v1251 = vunpack.c.h.b16 %v1203
        %v1252 = vpack.c.b16 %v1222, %v1220
        %v1253 = vpack.c.b16 %v1223, %v1221
        %v1254 = vpack.c.b16 %v1226, %v1224
        %v1255 = vpack.c.b16 %v1227, %v1225
        %v1256 = vpack.c.b16 %v1230, %v1228
        %v1257 = vpack.c.b16 %v1231, %v1229
        %v1258 = vpack.c.b16 %v1234, %v1232
        %v1259 = vpack.c.b16 %v1235, %v1233
        %v1260 = vpack.c.b16 %v1238, %v1236
        %v1261 = vpack.c.b16 %v1239, %v1237
        %v1262 = vpack.c.b16 %v1242, %v1240
        %v1263 = vpack.c.b16 %v1243, %v1241
        %v1264 = vpack.c.b16 %v1246, %v1244
        %v1265 = vpack.c.b16 %v1247, %v1245
        %v1266 = vpack.c.b16 %v1250, %v1248
        %v1267 = vpack.c.b16 %v1251, %v1249
        %1284 = vmatpush.bf16.msra.mxu0 %v1266
        %1285 = vmatpush.bf16.msra.mxu0 %v1264
        %1286 = vmatpush.bf16.msra.mxu0 %v1262
        %1287 = vmatpush.bf16.msra.mxu0 %v1260
        %1288 = vmatpush.bf16.msra.mxu0 %v1258
        %1289 = vmatpush.bf16.msra.mxu0 %v1256
        %1290 = vmatpush.bf16.msra.mxu0 %v1254
        %1291 = vmatpush.bf16.msra.mxu0 %v1252
        %1292 = vmatmul.bf16.gmra.mxu0 %v1183
        %v1293 = vpop.f32.mrf.mxu0
        %v1294 = vadd.f32 0.0, %v1293
        %v1295 = vpop.f32.mrf.mxu0
        %v1296 = vadd.f32 0.0, %v1295
        %1297 = vmatmul.bf16.gmra.mxu0 %v1184
        %v1298 = vpop.f32.mrf.mxu0
        %v1299 = vadd.f32 0.0, %v1298
        %v1300 = vpop.f32.mrf.mxu0
        %v1301 = vadd.f32 0.0, %v1300
        %1302 = vmatmul.bf16.gmra.mxu0 %v1185
        %v1303 = vpop.f32.mrf.mxu0
        %v1304 = vadd.f32 0.0, %v1303
        %v1305 = vpop.f32.mrf.mxu0
        %v1306 = vadd.f32 0.0, %v1305
        %1307 = vmatmul.bf16.gmra.mxu0 %v1186
        %v1308 = vpop.f32.mrf.mxu0
        %v1309 = vadd.f32 0.0, %v1308
        %v1310 = vpop.f32.mrf.mxu0
        %v1311 = vadd.f32 0.0, %v1310
        %1312 = vdwg.mxu0
        %1313 = vmatpush.bf16.msra.mxu0 %v1267
        %1314 = vmatpush.bf16.msra.mxu0 %v1265
        %1315 = vmatpush.bf16.msra.mxu0 %v1263
        %1316 = vmatpush.bf16.msra.mxu0 %v1261
        %1317 = vmatpush.bf16.msra.mxu0 %v1259
        %1318 = vmatpush.bf16.msra.mxu0 %v1257
        %1319 = vmatpush.bf16.msra.mxu0 %v1255
        %1320 = vmatpush.bf16.msra.mxu0 %v1253
        %1321 = vmatmul.bf16.gmra.mxu0 %v1183
        %v1322 = vpop.f32.mrf.mxu0
        %v1323 = vadd.f32 0.0, %v1322
        %v1324 = vpop.f32.mrf.mxu0
        %v1325 = vadd.f32 0.0, %v1324
        %1326 = vmatmul.bf16.gmra.mxu0 %v1184
        %v1327 = vpop.f32.mrf.mxu0
        %v1328 = vadd.f32 0.0, %v1327
        %v1329 = vpop.f32.mrf.mxu0
        %v1330 = vadd.f32 0.0, %v1329
        %1331 = vmatmul.bf16.gmra.mxu0 %v1185
        %v1332 = vpop.f32.mrf.mxu0
        %v1333 = vadd.f32 0.0, %v1332
        %v1334 = vpop.f32.mrf.mxu0
        %v1335 = vadd.f32 0.0, %v1334
        %1336 = vmatmul.bf16.gmra.mxu0 %v1186
        %v1337 = vpop.f32.mrf.mxu0
        %v1338 = vadd.f32 0.0, %v1337
        %v1339 = vpop.f32.mrf.mxu0
        %v1340 = vadd.f32 0.0, %v1339
        %1341 = vdwg.mxu0
        %v1342 = vadd.f32 %v1093, %v1294
        %v1343 = vadd.f32 %v1094, %v1323
        %v1344 = vadd.f32 %v1095, %v1296
        %v1345 = vadd.f32 %v1096, %v1325
        %v1346 = vadd.f32 %v1097, %v1299
        %v1347 = vadd.f32 %v1098, %v1328
        %v1348 = vadd.f32 %v1099, %v1301
        %v1349 = vadd.f32 %v1100, %v1330
        %v1350 = vadd.f32 %v1101, %v1304
        %v1351 = vadd.f32 %v1102, %v1333
        %v1352 = vadd.f32 %v1103, %v1306
        %v1353 = vadd.f32 %v1104, %v1335
        %v1354 = vadd.f32 %v1105, %v1309
        %v1355 = vadd.f32 %v1106, %v1338
        %v1356 = vadd.f32 %v1107, %v1311
        %v1357 = vadd.f32 %v1108, %v1340
        %v1358 = vxor.u32 %v1343, 2147483648
        %v1359 = vxor.u32 %v1345, 2147483648
        %v1360 = vxor.u32 %v1347, 2147483648
        %v1361 = vxor.u32 %v1349, 2147483648
        %v1362 = vxor.u32 %v1351, 2147483648
        %v1363 = vxor.u32 %v1353, 2147483648
        %v1364 = vxor.u32 %v1355, 2147483648
        %v1365 = vxor.u32 %v1357, 2147483648
        %v1366 = vmul.f32 %v1358, 1.442695
        %v1367 = vpow.pop %v1366
        %v1368 = vmul.f32 %v1359, 1.442695
        %v1369 = vpow.pop %v1368
        %v1370 = vmul.f32 %v1360, 1.442695
        %v1371 = vpow.pop %v1370
        %v1372 = vmul.f32 %v1361, 1.442695
        %v1373 = vpow.pop %v1372
        %v1374 = vmul.f32 %v1362, 1.442695
        %v1375 = vpow.pop %v1374
        %v1376 = vmul.f32 %v1363, 1.442695
        %v1377 = vpow.pop %v1376
        %v1378 = vmul.f32 %v1364, 1.442695
        %v1379 = vpow.pop %v1378
        %v1380 = vmul.f32 %v1365, 1.442695
        %v1381 = vpow.pop %v1380
        %v1382 = vadd.f32 %v1367, 1.0
        %v1383 = vadd.f32 %v1369, 1.0
        %v1384 = vadd.f32 %v1371, 1.0
        %v1385 = vadd.f32 %v1373, 1.0
        %v1386 = vadd.f32 %v1375, 1.0
        %v1387 = vadd.f32 %v1377, 1.0
        %v1388 = vadd.f32 %v1379, 1.0
        %v1389 = vadd.f32 %v1381, 1.0
        %v1390 = vrcp.pop %v1382
        %v1391 = vmul.f32 %v1382, %v1390
        %v1392 = vsub.f32 1.0, %v1391
        %v1393 = vmul.f32 %v1390, %v1392
        %v1394 = vadd.f32 %v1390, %v1393
        %vm1395 = vweird.f32 %v1382
        %vm1396 = vweird.f32 %v1390
        %vm1397 = vmor %vm1395, %vm1396
        %v1398 = vsel %vm1397, %v1390, %v1394
        %v1399 = vand.u32 2147483647, %v1382
        %vm1400 = vcmp.eq.f32.partialorder %v1399, 8.507059e+37
        %v1401 = vand.u32 %v1382, 2147483648
        %v1402 = vor.u32 1.1754944e-38, %v1401
        %v1403 = vsel %vm1400, %v1402, %v1398
        %v1404 = vmul.f32 1.0, %v1403
        %v1405 = vrcp.pop %v1383
        %v1406 = vmul.f32 %v1383, %v1405
        %v1407 = vsub.f32 1.0, %v1406
        %v1408 = vmul.f32 %v1405, %v1407
        %v1409 = vadd.f32 %v1405, %v1408
        %vm1410 = vweird.f32 %v1383
        %vm1411 = vweird.f32 %v1405
        %vm1412 = vmor %vm1410, %vm1411
        %v1413 = vsel %vm1412, %v1405, %v1409
        %v1414 = vand.u32 2147483647, %v1383
        %vm1415 = vcmp.eq.f32.partialorder %v1414, 8.507059e+37
        %v1416 = vand.u32 %v1383, 2147483648
        %v1417 = vor.u32 1.1754944e-38, %v1416
        %v1418 = vsel %vm1415, %v1417, %v1413
        %v1419 = vmul.f32 1.0, %v1418
        %v1420 = vrcp.pop %v1384
        %v1421 = vmul.f32 %v1384, %v1420
        %v1422 = vsub.f32 1.0, %v1421
        %v1423 = vmul.f32 %v1420, %v1422
        %v1424 = vadd.f32 %v1420, %v1423
        %vm1425 = vweird.f32 %v1384
        %vm1426 = vweird.f32 %v1420
        %vm1427 = vmor %vm1425, %vm1426
        %v1428 = vsel %vm1427, %v1420, %v1424
        %v1429 = vand.u32 2147483647, %v1384
        %vm1430 = vcmp.eq.f32.partialorder %v1429, 8.507059e+37
        %v1431 = vand.u32 %v1384, 2147483648
        %v1432 = vor.u32 1.1754944e-38, %v1431
        %v1433 = vsel %vm1430, %v1432, %v1428
        %v1434 = vmul.f32 1.0, %v1433
        %v1435 = vrcp.pop %v1385
        %v1436 = vmul.f32 %v1385, %v1435
        %v1437 = vsub.f32 1.0, %v1436
        %v1438 = vmul.f32 %v1435, %v1437
        %v1439 = vadd.f32 %v1435, %v1438
        %vm1440 = vweird.f32 %v1385
        %vm1441 = vweird.f32 %v1435
        %vm1442 = vmor %vm1440, %vm1441
        %v1443 = vsel %vm1442, %v1435, %v1439
        %v1444 = vand.u32 2147483647, %v1385
        %vm1445 = vcmp.eq.f32.partialorder %v1444, 8.507059e+37
        %v1446 = vand.u32 %v1385, 2147483648
        %v1447 = vor.u32 1.1754944e-38, %v1446
        %v1448 = vsel %vm1445, %v1447, %v1443
        %v1449 = vmul.f32 1.0, %v1448
        %v1450 = vrcp.pop %v1386
        %v1451 = vmul.f32 %v1386, %v1450
        %v1452 = vsub.f32 1.0, %v1451
        %v1453 = vmul.f32 %v1450, %v1452
        %v1454 = vadd.f32 %v1450, %v1453
        %vm1455 = vweird.f32 %v1386
        %vm1456 = vweird.f32 %v1450
        %vm1457 = vmor %vm1455, %vm1456
        %v1458 = vsel %vm1457, %v1450, %v1454
        %v1459 = vand.u32 2147483647, %v1386
        %vm1460 = vcmp.eq.f32.partialorder %v1459, 8.507059e+37
        %v1461 = vand.u32 %v1386, 2147483648
        %v1462 = vor.u32 1.1754944e-38, %v1461
        %v1463 = vsel %vm1460, %v1462, %v1458
        %v1464 = vmul.f32 1.0, %v1463
        %v1465 = vrcp.pop %v1387
        %v1466 = vmul.f32 %v1387, %v1465
        %v1467 = vsub.f32 1.0, %v1466
        %v1468 = vmul.f32 %v1465, %v1467
        %v1469 = vadd.f32 %v1465, %v1468
        %vm1470 = vweird.f32 %v1387
        %vm1471 = vweird.f32 %v1465
        %vm1472 = vmor %vm1470, %vm1471
        %v1473 = vsel %vm1472, %v1465, %v1469
        %v1474 = vand.u32 2147483647, %v1387
        %vm1475 = vcmp.eq.f32.partialorder %v1474, 8.507059e+37
        %v1476 = vand.u32 %v1387, 2147483648
        %v1477 = vor.u32 1.1754944e-38, %v1476
        %v1478 = vsel %vm1475, %v1477, %v1473
        %v1479 = vmul.f32 1.0, %v1478
        %v1480 = vrcp.pop %v1388
        %v1481 = vmul.f32 %v1388, %v1480
        %v1482 = vsub.f32 1.0, %v1481
        %v1483 = vmul.f32 %v1480, %v1482
        %v1484 = vadd.f32 %v1480, %v1483
        %vm1485 = vweird.f32 %v1388
        %vm1486 = vweird.f32 %v1480
        %vm1487 = vmor %vm1485, %vm1486
        %v1488 = vsel %vm1487, %v1480, %v1484
        %v1489 = vand.u32 2147483647, %v1388
        %vm1490 = vcmp.eq.f32.partialorder %v1489, 8.507059e+37
        %v1491 = vand.u32 %v1388, 2147483648
        %v1492 = vor.u32 1.1754944e-38, %v1491
        %v1493 = vsel %vm1490, %v1492, %v1488
        %v1494 = vmul.f32 1.0, %v1493
        %v1495 = vrcp.pop %v1389
        %v1496 = vmul.f32 %v1389, %v1495
        %v1497 = vsub.f32 1.0, %v1496
        %v1498 = vmul.f32 %v1495, %v1497
        %v1499 = vadd.f32 %v1495, %v1498
        %vm1500 = vweird.f32 %v1389
        %vm1501 = vweird.f32 %v1495
        %vm1502 = vmor %vm1500, %vm1501
        %v1503 = vsel %vm1502, %v1495, %v1499
        %v1504 = vand.u32 2147483647, %v1389
        %vm1505 = vcmp.eq.f32.partialorder %v1504, 8.507059e+37
        %v1506 = vand.u32 %v1389, 2147483648
        %v1507 = vor.u32 1.1754944e-38, %v1506
        %v1508 = vsel %vm1505, %v1507, %v1503
        %v1509 = vmul.f32 1.0, %v1508
        %v1510 = vmul.f32 %v1342, %v1404
        %v1511 = vmul.f32 %v1344, %v1419
        %v1512 = vmul.f32 %v1346, %v1434
        %v1513 = vmul.f32 %v1348, %v1449
        %v1514 = vmul.f32 %v1350, %v1464
        %v1515 = vmul.f32 %v1352, %v1479
        %v1516 = vmul.f32 %v1354, %v1494
        %v1517 = vmul.f32 %v1356, %v1509
        %v1518 = vadd.f32 %v1510, %v687
        %v1519 = vadd.f32 %v1511, %v688
        %v1520 = vadd.f32 %v1512, %v689
        %v1521 = vadd.f32 %v1513, %v690
        %v1522 = vadd.f32 %v1514, %v691
        %v1523 = vadd.f32 %v1515, %v692
        %v1524 = vadd.f32 %v1516, %v693
        %v1525 = vadd.f32 %v1517, %v694
        %v1526 = vmul.f32 %v1518, 0.70710677
        %v1527 = vmul.f32 %v1519, 0.70710677
        %v1528 = vmul.f32 %v1520, 0.70710677
        %v1529 = vmul.f32 %v1521, 0.70710677
        %v1530 = vmul.f32 %v1522, 0.70710677
        %v1531 = vmul.f32 %v1523, 0.70710677
        %v1532 = vmul.f32 %v1524, 0.70710677
        %v1533 = vmul.f32 %v1525, 0.70710677
        %1534 = vst [vmem:[#allocation2] sm:$0xff] %v1526
        %1535 = vst [vmem:[#allocation2 + $0x8] sm:$0xff] %v1527
        %1536 = vst [vmem:[#allocation2 + $0x10] sm:$0xff] %v1528
        %1537 = vst [vmem:[#allocation2 + $0x18] sm:$0xff] %v1529
        %1538 = vst [vmem:[#allocation2 + $0x20] sm:$0xff] %v1530
        %1539 = vst [vmem:[#allocation2 + $0x28] sm:$0xff] %v1531
        %1540 = vst [vmem:[#allocation2 + $0x30] sm:$0xff] %v1532
        %1541 = vst [vmem:[#allocation2 + $0x38] sm:$0xff] %v1533
        %p1542 = scmp.eq.s32.totalorder %s41, 2
        // Predicated region
        $region73: #{tpu_custom_call.1} parent=63 // pred_check
          %p1543 = pneg %p1542
        $region74: #{tpu_custom_call.1} parent=63 // pred_check_branch
          %1545 = sbr.rel (%p1543) target = $region76
        $region75: #{tpu_custom_call.1} parent=63 // pred_region
          %v1546 = vadd.f32 %v1526, %v1527
          %v1547 = vrot.slane %v1546, 4
          %v1548 = vadd.f32 %v1546, %v1547
          %v1549 = vrot.slane %v1548, 2
          %v1550 = vadd.f32 %v1548, %v1549
          %v1551 = vrot.slane %v1550, 1
          %v1552 = vadd.f32 %v1550, %v1551
          %v1553 = vadd.f32 %v1528, %v1529
          %v1554 = vrot.slane %v1553, 4
          %v1555 = vadd.f32 %v1553, %v1554
          %v1556 = vrot.slane %v1555, 2
          %v1557 = vadd.f32 %v1555, %v1556
          %v1558 = vrot.slane %v1557, 1
          %v1559 = vadd.f32 %v1557, %v1558
          %v1560 = vadd.f32 %v1530, %v1531
          %v1561 = vrot.slane %v1560, 4
          %v1562 = vadd.f32 %v1560, %v1561
          %v1563 = vrot.slane %v1562, 2
          %v1564 = vadd.f32 %v1562, %v1563
          %v1565 = vrot.slane %v1564, 1
          %v1566 = vadd.f32 %v1564, %v1565
          %v1567 = vadd.f32 %v1532, %v1533
          %v1568 = vrot.slane %v1567, 4
          %v1569 = vadd.f32 %v1567, %v1568
          %v1570 = vrot.slane %v1569, 2
          %v1571 = vadd.f32 %v1569, %v1570
          %v1572 = vrot.slane %v1571, 1
          %v1573 = vadd.f32 %v1571, %v1572
          %vm1574 = vcmask 1040384
          %v1575 = vsel %vm1574, %v1552, %v1559
          %vm1576 = vcmask 1041408
          %v1577 = vsel %vm1576, %v1575, %v1566
          %vm1578 = vcmask 1042432
          %v1579 = vsel %vm1578, %v1577, %v1573
          %v1580 = vmul.f32 %v1579, 0.08185353
          %v1581 = vld [vmem:[%s9] sm:$0xff]
          %v1582 = vld [vmem:[%s9 + $0x8] sm:$0xff]
          %v1583 = vld [vmem:[%s9 + $0x10] sm:$0xff]
          %v1584 = vld [vmem:[%s9 + $0x18] sm:$0xff]
          %v1585 = vld [vmem:[%s9 + $0x20] sm:$0xff]
          %v1586 = vld [vmem:[%s9 + $0x28] sm:$0xff]
          %v1587 = vld [vmem:[%s9 + $0x30] sm:$0xff]
          %v1588 = vld [vmem:[%s9 + $0x38] sm:$0xff]
          %v1589 = vld [vmem:[%s9 + $0x40] sm:$0xff]
          %v1590 = vld [vmem:[%s9 + $0x48] sm:$0xff]
          %v1591 = vld [vmem:[%s9 + $0x50] sm:$0xff]
          %v1592 = vld [vmem:[%s9 + $0x58] sm:$0xff]
          %v1593 = vld [vmem:[%s9 + $0x60] sm:$0xff]
          %v1594 = vld [vmem:[%s9 + $0x68] sm:$0xff]
          %v1595 = vld [vmem:[%s9 + $0x70] sm:$0xff]
          %v1596 = vld [vmem:[%s9 + $0x78] sm:$0xff]
          %v1597 = vld [vmem:[#allocation3] sm:$0x1]
          %v1599 = vperm.slane %v1597, 0
          %1601 = vmatpush.msra.mxu0 %v1596
          %1602 = vmatpush.msra.mxu0 %v1595
          %1603 = vmatpush.msra.mxu0 %v1594
          %1604 = vmatpush.msra.mxu0 %v1593
          %1605 = vmatpush.msra.mxu0 %v1592
          %1606 = vmatpush.msra.mxu0 %v1591
          %1607 = vmatpush.msra.mxu0 %v1590
          %1608 = vmatpush.msra.mxu0 %v1589
          %1609 = vmatpush.msra.mxu0 %v1588
          %1610 = vmatpush.msra.mxu0 %v1587
          %1611 = vmatpush.msra.mxu0 %v1586
          %1612 = vmatpush.msra.mxu0 %v1585
          %1613 = vmatpush.msra.mxu0 %v1584
          %1614 = vmatpush.msra.mxu0 %v1583
          %1615 = vmatpush.msra.mxu0 %v1582
          %1616 = vmatpush.msra.mxu0 %v1581
          %1617 = vmatmul.f32.gmra.mxu0 %v1580
          %v1618 = vpop.f32.mrf.mxu0
          %v1619 = vadd.f32 %v1599, %v1618
          %1620 = vdwg.mxu0
          %vm1621 = vcmask 3072
          %1622 = vst.msk [vmem:[%s537] sm:$0xf] %vm1621, %v1619
          %v1623 = vpack.c.bf16 %v1527, %v1526
          %v1624 = vpack.c.bf16 %v1529, %v1528
          %v1625 = vpack.c.bf16 %v1531, %v1530
          %v1626 = vpack.c.bf16 %v1533, %v1532
          %v1627 = vld [vmem:[%s7] sm:$0xf]
          %v1628 = vld [vmem:[%s7 + $0x4] sm:$0xf]
          %v1629 = vld [vmem:[%s7 + $0x8] sm:$0xf]
          %v1630 = vld [vmem:[%s7 + $0xc] sm:$0xf]
          %v1631 = vld [vmem:[%s7 + $0x10] sm:$0xf]
          %v1632 = vld [vmem:[%s7 + $0x14] sm:$0xf]
          %v1633 = vld [vmem:[%s7 + $0x18] sm:$0xf]
          %v1634 = vld [vmem:[%s7 + $0x1c] sm:$0xf]
          %v1635 = vld [vmem:[%s7 + $0x20] sm:$0xf]
          %v1636 = vld [vmem:[%s7 + $0x24] sm:$0xf]
          %v1637 = vld [vmem:[%s7 + $0x28] sm:$0xf]
          %v1638 = vld [vmem:[%s7 + $0x2c] sm:$0xf]
          %v1639 = vld [vmem:[%s7 + $0x30] sm:$0xf]
          %v1640 = vld [vmem:[%s7 + $0x34] sm:$0xf]
          %v1641 = vld [vmem:[%s7 + $0x38] sm:$0xf]
          %v1642 = vld [vmem:[%s7 + $0x3c] sm:$0xf]
          %v1643 = vld [vmem:[%s8] sm:$0x1]
          %v1645 = vperm.slane %v1643, 0
          %v1663 = vunpack.c.l.b16 %v1627
          %v1664 = vunpack.c.l.b16 %v1628
          %v1665 = vunpack.c.l.b16 %v1629
          %v1666 = vunpack.c.l.b16 %v1630
          %v1667 = vunpack.c.l.b16 %v1631
          %v1668 = vunpack.c.l.b16 %v1632
          %v1669 = vunpack.c.l.b16 %v1633
          %v1670 = vunpack.c.l.b16 %v1634
          %v1671 = vunpack.c.l.b16 %v1635
          %v1672 = vunpack.c.l.b16 %v1636
          %v1673 = vunpack.c.l.b16 %v1637
          %v1674 = vunpack.c.l.b16 %v1638
          %v1675 = vunpack.c.l.b16 %v1639
          %v1676 = vunpack.c.l.b16 %v1640
          %v1677 = vunpack.c.l.b16 %v1641
          %v1678 = vunpack.c.l.b16 %v1642
          %v1679 = vpack.c.b16 %v1664, %v1663
          %v1680 = vpack.c.b16 %v1666, %v1665
          %v1681 = vpack.c.b16 %v1668, %v1667
          %v1682 = vpack.c.b16 %v1670, %v1669
          %v1683 = vpack.c.b16 %v1672, %v1671
          %v1684 = vpack.c.b16 %v1674, %v1673
          %v1685 = vpack.c.b16 %v1676, %v1675
          %v1686 = vpack.c.b16 %v1678, %v1677
          %1695 = vmatpush.bf16.msra.mxu0 %v1686
          %1696 = vmatpush.bf16.msra.mxu0 %v1685
          %1697 = vmatpush.bf16.msra.mxu0 %v1684
          %1698 = vmatpush.bf16.msra.mxu0 %v1683
          %1699 = vmatpush.bf16.msra.mxu0 %v1682
          %1700 = vmatpush.bf16.msra.mxu0 %v1681
          %1701 = vmatpush.bf16.msra.mxu0 %v1680
          %1702 = vmatpush.bf16.msra.mxu0 %v1679
          %1703 = vmatmul.bf16.gmra.mxu0 %v1623
          %v1704 = vpop.f32.mrf.mxu0
          %v1705 = vadd.f32 %v1645, %v1704
          %v1706 = vpop.f32.mrf.mxu0
          %v1707 = vadd.f32 %v1645, %v1706
          %1708 = vmatmul.bf16.gmra.mxu0 %v1624
          %v1709 = vpop.f32.mrf.mxu0
          %v1710 = vadd.f32 %v1645, %v1709
          %v1711 = vpop.f32.mrf.mxu0
          %v1712 = vadd.f32 %v1645, %v1711
          %1713 = vmatmul.bf16.gmra.mxu0 %v1625
          %v1714 = vpop.f32.mrf.mxu0
          %v1715 = vadd.f32 %v1645, %v1714
          %v1716 = vpop.f32.mrf.mxu0
          %v1717 = vadd.f32 %v1645, %v1716
          %1718 = vmatmul.bf16.gmra.mxu0 %v1626
          %v1719 = vpop.f32.mrf.mxu0
          %v1720 = vadd.f32 %v1645, %v1719
          %v1721 = vpop.f32.mrf.mxu0
          %v1722 = vadd.f32 %v1645, %v1721
          %1723 = vdwg.mxu0
          %v1724 = vtanh.pop %v1705
          %v1725 = vtanh.pop %v1707
          %v1726 = vtanh.pop %v1710
          %v1727 = vtanh.pop %v1712
          %v1728 = vtanh.pop %v1715
          %v1729 = vtanh.pop %v1717
          %v1730 = vtanh.pop %v1720
          %v1731 = vtanh.pop %v1722
          %1732 = vst [vmem:[%s515] sm:$0xff] %v1724
          %1733 = vst [vmem:[%s515 + $0x8] sm:$0xff] %v1725
          %1734 = vst [vmem:[%s515 + $0x10] sm:$0xff] %v1726
          %1735 = vst [vmem:[%s515 + $0x18] sm:$0xff] %v1727
          %1736 = vst [vmem:[%s515 + $0x20] sm:$0xff] %v1728
          %1737 = vst [vmem:[%s515 + $0x28] sm:$0xff] %v1729
          %1738 = vst [vmem:[%s515 + $0x30] sm:$0xff] %v1730
          %1739 = vst [vmem:[%s515 + $0x38] sm:$0xff] %v1731
        $region76: #{tpu_custom_call.1} parent=63 // pred_fallthru
          _
        %p1740 = scmp.lt.s32.totalorder %s40, 1
        %s1741 = scalar_select %p1740, %s40, 1
        %s1742 = smul.addr %s1741, 4
        %s1743 = scalar_lea.vmem %s11, %s1742
        %s1744 = sand.u32 %s328, 1
        %s1745 = scalar_lea.sflag [#allocation6], %s1744
        %s1746 = sand.u32 %s328, 1
        %s1747 = smul.addr %s1746, 64
        %s1748 = scalar_lea.vmem [#allocation7], %s1747
        %s1749 = sand.u32 %s354, 1
        %s1750 = scalar_lea.sflag [#allocation9], %s1749
        %s1751 = sand.u32 %s354, 1
        %s1752 = smul.addr %s1751, 64
        %s1753 = scalar_lea.vmem [#allocation8], %s1752
        // Predicated region
        $region77: #{tpu_custom_call.1} parent=63 // pred_check
          %p1754 = pneg %p312
        $region78: #{tpu_custom_call.1} parent=63 // pred_check_branch
          %1756 = sbr.rel (%p1754) target = $region80
        $region79: #{tpu_custom_call.1} parent=63 // pred_region
          _
        $region80: #{tpu_custom_call.1} parent=63 // pred_fallthru
          _
        // Predicated region
        $region81: #{tpu_custom_call.1} parent=63 // pred_check
          %p1757 = pneg %p338
        $region82: #{tpu_custom_call.1} parent=63 // pred_check_branch
          %1759 = sbr.rel (%p1757) target = $region84
        $region83: #{tpu_custom_call.1} parent=63 // pred_region
          %s1760 = smul.u32 4, %s40
          %1762 = vsyncadd %s1745, 0
          %s1763 = smul.addr %s1760, 2
          %s1764 = smul.addr %s1763, 8
          %s1765 = scalar_lea.hbm %s12, %s1764
          %s1766 = sshll.u32 %s1748, 4
          %s1767 = int_to_ptr.vmem [resolvable:$true] %s1766
          %s1768 = sshll.u32 %s1765, 4
          %s1769 = int_to_ptr.hbm [resolvable:$true] %s1768
          %1774 = dma.vmem_to_hbm [thread:$0]  %s1767, 1024, %s1769, %s1745, 128, 128, 8
        $region84: #{tpu_custom_call.1} parent=63 // pred_fallthru
          _
        // Predicated region
        $region85: #{tpu_custom_call.1} parent=63 // pred_check
          %p1775 = pneg %p364
        $region86: #{tpu_custom_call.1} parent=63 // pred_check_branch
          %1777 = sbr.rel (%p1775) target = $region88
        $region87: #{tpu_custom_call.1} parent=63 // pred_region
          %s1778 = smul.u32 4, %s40
          %1780 = vsyncadd %s1750, 0
          %s1781 = smul.addr %s1778, 2
          %s1782 = smul.addr %s1781, 8
          %s1783 = scalar_lea.hbm %s13, %s1782
          %s1784 = sshll.u32 %s1753, 4
          %s1785 = int_to_ptr.vmem [resolvable:$true] %s1784
          %s1786 = sshll.u32 %s1783, 4
          %s1787 = int_to_ptr.hbm [resolvable:$true] %s1786
          %1792 = dma.vmem_to_hbm [thread:$0]  %s1785, 1024, %s1787, %s1750, 128, 128, 8
        $region88: #{tpu_custom_call.1} parent=63 // pred_fallthru
          _
      $region64: #{tpu_custom_call.1} parent=5 // pred_fallthru
        _
      %p1793 = scmp.le.s32.totalorder 2, %s31
      // Predicated region
      $region89: #{tpu_custom_call.1} parent=5 // pred_check
        %p1794 = pneg %p1793
      $region90: #{tpu_custom_call.1} parent=5 // pred_check_branch
        %1796 = sbr.rel (%p1794) target = $region92
      $region91: #{tpu_custom_call.1} parent=5 // pred_region
        %s1797 = ssub.s32 %s31, 2
        // Predicated region
        $region93: #{tpu_custom_call.1} parent=91 // pred_check
          %p1798 = pneg %p318
        $region94: #{tpu_custom_call.1} parent=91 // pred_check_branch
          %1800 = sbr.rel (%p1798) target = $region96
        $region95: #{tpu_custom_call.1} parent=91 // pred_region
          %p1801 = scmp.lt.s32.totalorder %s42, 1
          %s1802 = scalar_select %p1801, %s42, 1
          %s1803 = smul.addr %s1802, 4
          %s1804 = scalar_lea.vmem %s11, %s1803
        $region96: #{tpu_custom_call.1} parent=91 // pred_fallthru
          _
        // Predicated region
        $region97: #{tpu_custom_call.1} parent=91 // pred_check
          %p1805 = pneg %p344
        $region98: #{tpu_custom_call.1} parent=91 // pred_check_branch
          %1807 = sbr.rel (%p1805) target = $region100
        $region99: #{tpu_custom_call.1} parent=91 // pred_region
          %s1808 = sand.u32 %s329, 1
          %s1809 = scalar_lea.sflag [#allocation6], %s1808
          %s1810 = sand.u32 %s329, 1
          %s1811 = smul.addr %s1810, 64
          %s1812 = scalar_lea.vmem [#allocation7], %s1811
          %1814 = dma.done %s1809, 1024
        $region100: #{tpu_custom_call.1} parent=91 // pred_fallthru
          _
        // Predicated region
        $region101: #{tpu_custom_call.1} parent=91 // pred_check
          %p1815 = pneg %p370
        $region102: #{tpu_custom_call.1} parent=91 // pred_check_branch
          %1817 = sbr.rel (%p1815) target = $region104
        $region103: #{tpu_custom_call.1} parent=91 // pred_region
          %s1818 = sand.u32 %s355, 1
          %s1819 = scalar_lea.sflag [#allocation9], %s1818
          %s1820 = sand.u32 %s355, 1
          %s1821 = smul.addr %s1820, 64
          %s1822 = scalar_lea.vmem [#allocation8], %s1821
          %1824 = dma.done %s1819, 1024
        $region104: #{tpu_custom_call.1} parent=91 // pred_fallthru
          _
      $region92: #{tpu_custom_call.1} parent=5 // pred_fallthru
        _
    $region6: #{tpu_custom_call.1} parent=1 // loop_footer
      %s35 = sadd.s32 1, %s31
    $region7: #{tpu_custom_call.1} parent=1 // loop_footer_branch
      %30 = sbr.rel target = $region3
    $region8: #{tpu_custom_call.1} parent=1 // loop_exit
      _
    %1825 = vsyncpa [#allocation5], 1
    %s1826 = scalar_lea.sflag [#allocation5], 1
    %1827 = vsyncpa %s1826, 1
    %1828 = vsyncpa [#allocation6], 1
    %s1829 = scalar_lea.sflag [#allocation6], 1
    %1830 = vsyncpa %s1829, 1
    %1831 = vsyncpa [#allocation9], 1
    %s1832 = scalar_lea.sflag [#allocation9], 1
    %1833 = vsyncpa %s1832, 1

</llo_original>
